<compile_context>
chip_gen: v5e
topology: v5e:2x2
jax: 0.10.0
libtpu: 0.0.40
codegen_flags: <defaults>
</compile_context>

<pallas_src>
import jax
import jax.numpy as jnp
from jax.experimental import pallas as pl
from jax.experimental.pallas import tpu as pltpu

# ---- static config (Leduc-like env_bldr) -------------------------------------------------
RANGE_SIZE   = 6                      # number of private-card range indices (Leduc)
BOARD_START  = 10                     # env_bldr.obs_board_idxs[0]
BOARD_LEN    = 6                      # len(env_bldr.obs_board_idxs) == obs_size_board
BOARD_STOP   = BOARD_START + BOARD_LEN
PUB_OBS_SIZE = 30                     # env_bldr.pub_obs_size
HIST_LEN     = PUB_OBS_SIZE - BOARD_LEN
DIM          = 32                     # mpm_args.dim
CARD_OUT     = DIM                    # card_emb.out_size
IN_L1        = HIST_LEN + 2 * CARD_OUT  # layer_1 in_features
UNKNOWN      = 8888                   # "unknown opponent card" marker


# ---- kernel ------------------------------------------------------------------------------
def _mpm_flat_baseline_kernel(pub_ref, r01_ref,
                              w1p_ref, estk_ref, bw0_ref, bw1_ref,
                              w2_ref, w3_ref, cvec_ref,
                              out_ref):
    pub = pub_ref[...]                                  # [tb, PUB_OBS_SIZE] f32
    r01 = r01_ref[...]                                  # [tb, 2] int32 (pre-split r0, r1)
    r0 = r01[:, 0:1]
    r1 = r01[:, 1:2]

    unk0 = r0 == UNKNOWN                                # [tb, 1] bool
    unk1 = r1 == UNKNOWN
    m0 = jnp.where(unk0, 0.0, 1.0)                      # [tb, 1] f32 validity masks
    m1 = jnp.where(unk1, 0.0, 1.0)

    # merged masked one-hot over 2*RANGE_SIZE lanes: lane r0 (if known), lane r1+6 (if known)
    t0 = jnp.where(unk0, -1, r0)
    t1 = jnp.where(unk1, -1, r1 + RANGE_SIZE)
    lanes = jax.lax.broadcasted_iota(jnp.int32, (pub.shape[0], 2 * RANGE_SIZE), 1)
    oh = (((lanes == t0) & (lanes < RANGE_SIZE)) |
          ((lanes == t1) & (lanes >= RANGE_SIZE))).astype(jnp.float32)   # [tb, 12]

    board = pub[:, BOARD_START:BOARD_STOP]              # [tb, BOARD_LEN]

    cvec = cvec_ref[...]                                # [5, DIM] packed constants
    ucst = cvec[0:1, :]   # u0 + u1 + b1
    d0   = cvec[1:2, :]   # board_b@W1c0 - u0
    d1   = cvec[2:3, :]   # board_b@W1c1 - u1
    b2   = cvec[3:4, :]
    b3   = cvec[4:5, :]

    # layer 1 with the card-embedding path folded in (see fold_params for the algebra)
    y = (jnp.dot(pub, w1p_ref[...], preferred_element_type=jnp.float32)
         + jnp.dot(oh, estk_ref[...], preferred_element_type=jnp.float32)
         + jnp.dot(board * m0, bw0_ref[...], preferred_element_type=jnp.float32)
         + jnp.dot(board * m1, bw1_ref[...], preferred_element_type=jnp.float32)
         + m0 * d0 + m1 * d1 + ucst)
    y = jax.nn.relu(y)

    # residual layers 2 and 3 (A == relu, dropout p=0)
    y = jax.nn.relu(jnp.dot(y, w2_ref[...], preferred_element_type=jnp.float32) + b2 + y)
    y = jax.nn.relu(jnp.dot(y, w3_ref[...], preferred_element_type=jnp.float32) + b3 + y)
    out_ref[...] = y


# ---- host-side algebraic fold of the card-embedding path into layer_1 --------------------
def fold_params(params):
    priv_emb, board_w, board_b, w1, b1, w2, b2, w3, b3 = params

    w1_hist = w1[:HIST_LEN]                            # [24, 32]
    w1_c0   = w1[HIST_LEN:HIST_LEN + CARD_OUT]         # [32, 32]
    w1_c1   = w1[HIST_LEN + CARD_OUT:]                 # [32, 32]

    # hist @ w1_hist  ==  pub @ w1_pub  (board rows zeroed, hist rows scattered back)
    w1_pub = jnp.zeros((PUB_OBS_SIZE, DIM), jnp.float32)
    w1_pub = w1_pub.at[:BOARD_START].set(w1_hist[:BOARD_START])
    w1_pub = w1_pub.at[BOARD_STOP:].set(w1_hist[BOARD_START:])

    # card_i @ w1_ci = m_i*(priv_emb[r_i]@w1_ci + board@(board_w@w1_ci) + board_b@w1_ci)
    #                  + (1-m_i)*(-sum_rows(w1_ci))
    e0  = priv_emb @ w1_c0                             # [6, 32]
    e1  = priv_emb @ w1_c1                             # [6, 32]
    estk = jnp.concatenate([e0, e1], axis=0)           # [12, 32]
    bw0 = board_w @ w1_c0                              # [6, 32]
    bw1 = board_w @ w1_c1                              # [6, 32]
    bc0 = board_b @ w1_c0                              # [1, 32]
    bc1 = board_b @ w1_c1                              # [1, 32]
    u0  = -jnp.sum(w1_c0, axis=0, keepdims=True)       # contribution of all(-1) unknown card
    u1  = -jnp.sum(w1_c1, axis=0, keepdims=True)

    ucst = u0 + u1 + b1                                # constant term (incl. layer-1 bias)
    d0   = bc0 - u0
    d1   = bc1 - u1
    cvec = jnp.concatenate([ucst, d0, d1, b2, b3], axis=0)   # [5, 32]

    return w1_pub, estk, bw0, bw1, w2, w3, cvec


# ---- wrapper -----------------------------------------------------------------------------
def mpm_flat_baseline(pub_obses, range_idxs, params, *, tb=1024):
    """tb: batch tile; sweep 512-4096 in production. Keep (padded B)//tb >= 2 on v7x so
    dimension_semantics=("parallel",) can use both TensorCores."""
    assert tb % 8 == 0
    B = pub_obses.shape[0]

    pub = pub_obses.astype(jnp.float32)
    r = range_idxs.astype(jnp.int32)
    r01 = jnp.stack([r // 10000, r % 10000], axis=-1)  # int div/mod done outside the kernel

    B_pad = ((B + tb - 1) // tb) * tb
    if B_pad != B:
        pub = jnp.pad(pub, ((0, B_pad - B), (0, 0)))
        r01 = jnp.pad(r01, ((0, B_pad - B), (0, 0)))

    w1_pub, estk, bw0, bw1, w2, w3, cvec = fold_params(params)

    def full_spec(a):                                   # whole weight resident every step
        return pl.BlockSpec(a.shape, lambda i: (0, 0))

    out = pl.pallas_call(
        _mpm_flat_baseline_kernel,
        out_shape=jax.ShapeDtypeStruct((B_pad, DIM), jnp.float32),
        grid=(B_pad // tb,),
        in_specs=[
            pl.BlockSpec((tb, PUB_OBS_SIZE), lambda i: (i, 0)),   # pub_obses batch tile
            pl.BlockSpec((tb, 2), lambda i: (i, 0)),              # (r0, r1) batch tile
            full_spec(w1_pub), full_spec(estk),
            full_spec(bw0), full_spec(bw1),
            full_spec(w2), full_spec(w3), full_spec(cvec),
        ],
        out_specs=pl.BlockSpec((tb, DIM), lambda i: (i, 0)),
        compiler_params=pltpu.CompilerParams(dimension_semantics=("parallel",)),
    )(pub, r01, w1_pub, estk, bw0, bw1, w2, w3, cvec)

    return out[:B] if B_pad != B else out


# ---- deterministic parameter init (torch Linear-style uniform bounds) --------------------
def init_params(key):
    ks = jax.random.split(key, 9)

    def uni(k, shape, fan_in):
        bound = 1.0 / jnp.sqrt(jnp.float32(fan_in))
        return jax.random.uniform(k, shape, jnp.float32, -bound, bound)

    priv_emb = jax.random.normal(ks[0], (RANGE_SIZE, CARD_OUT), jnp.float32)   # Embedding
    board_w  = uni(ks[1], (BOARD_LEN, CARD_OUT), BOARD_LEN)
    board_b  = uni(ks[2], (1, CARD_OUT), BOARD_LEN)
    w1 = uni(ks[3], (IN_L1, DIM), IN_L1)
    b1 = uni(ks[4], (1, DIM), IN_L1)
    w2 = uni(ks[5], (DIM, DIM), DIM)
    b2 = uni(ks[6], (1, DIM), DIM)
    w3 = uni(ks[7], (DIM, DIM), DIM)
    b3 = uni(ks[8], (1, DIM), DIM)
    return (priv_emb, board_w, board_b, w1, b1, w2, b2, w3, b3)


# ---- pure-JAX reference (mirrors the PyTorch forward) ------------------------------------
def reference(pub_obses, range_idxs, params):
    priv_emb, board_w, board_b, w1, b1, w2, b2, w3, b3 = params
    pub = pub_obses.astype(jnp.float32)
    r = range_idxs.astype(jnp.int32)
    hist = jnp.concatenate([pub[:, :BOARD_START], pub[:, BOARD_STOP:]], axis=-1)
    board = pub[:, BOARD_START:BOARD_STOP]

    def card(rx):
        unk = (rx == UNKNOWN)
        rs = jnp.where(unk, 0, rx)
        emb = priv_emb[rs] + board @ board_w + board_b
        return jnp.where(unk[:, None], jnp.float32(-1.0), emb)

    r0 = r // 10000
    r1 = r % 10000
    y = jnp.concatenate([hist, card(r0), card(r1)], axis=-1)
    y = jax.nn.relu(y @ w1 + b1)
    y = jax.nn.relu(y @ w2 + b2 + y)
    y = jax.nn.relu(y @ w3 + b3 + y)
    return y


if __name__ == "__main__":
    key = jax.random.PRNGKey(0)
    kp, kx, kr0, kr1 = jax.random.split(key, 4)
    params = init_params(kp)

    B = 256
    pub = jax.random.uniform(kx, (B, PUB_OBS_SIZE), jnp.float32)
    r0 = jax.random.randint(kr0, (B,), 0, RANGE_SIZE)
    r1 = jax.random.randint(kr1, (B,), 0, RANGE_SIZE)
    # sprinkle in some 8888 "unknown opponent card" markers, as the sampler does
    r0 = r0.at[1].set(UNKNOWN)
    r0 = r0.at[17].set(UNKNOWN)
    r1 = r1.at[2].set(UNKNOWN)
    r1 = r1.at[200].set(UNKNOWN)
    range_idxs = (r0 * 10000 + r1).astype(jnp.int32)

    # tb=128 with B=256 -> 2 grid steps (keeps both v7x TensorCores busy even at this
    # small demo size); in production sweep tb in 512-4096.
    out = mpm_flat_baseline(pub, range_idxs, params, tb=128)
    out = jax.block_until_ready(out)

    ref = reference(pub, range_idxs, params)
    assert out.shape == (B, DIM)
    max_err = float(jnp.max(jnp.abs(out - ref)))
    assert jnp.allclose(out, ref, atol=1e-4, rtol=1e-4), max_err
    print("KERNEL_OK")
</pallas_src>

<mosaic_0001>
module attributes {stable_mosaic.version = 11 : i64} {
  func.func @_mpm_flat_baseline_kernel(%arg0: i32, %arg1: memref<128x30xf32, #tpu.memory_space<vmem>>, %arg2: memref<128x2xi32, #tpu.memory_space<vmem>>, %arg3: memref<30x32xf32, #tpu.memory_space<vmem>>, %arg4: memref<12x32xf32, #tpu.memory_space<vmem>>, %arg5: memref<6x32xf32, #tpu.memory_space<vmem>>, %arg6: memref<6x32xf32, #tpu.memory_space<vmem>>, %arg7: memref<32x32xf32, #tpu.memory_space<vmem>>, %arg8: memref<32x32xf32, #tpu.memory_space<vmem>>, %arg9: memref<5x32xf32, #tpu.memory_space<vmem>>, %arg10: memref<128x32xf32, #tpu.memory_space<vmem>>) attributes {dimension_semantics = [#tpu.dimension_semantics<parallel>], iteration_bounds = array<i64: 2>, scalar_prefetch = 0 : i64, scratch_operands = 0 : i64, tpu.core_type = #tpu.core_type<tc>, window_params = [{transform_indices = @transform_0, window_bounds = array<i64: 128, 30>}, {transform_indices = @transform_1, window_bounds = array<i64: 128, 2>}, {pipeline_mode = #tpu.pipeline_mode<synchronous>, transform_indices = @transform_2, window_bounds = array<i64: 30, 32>}, {pipeline_mode = #tpu.pipeline_mode<synchronous>, transform_indices = @transform_3, window_bounds = array<i64: 12, 32>}, {pipeline_mode = #tpu.pipeline_mode<synchronous>, transform_indices = @transform_4, window_bounds = array<i64: 6, 32>}, {pipeline_mode = #tpu.pipeline_mode<synchronous>, transform_indices = @transform_5, window_bounds = array<i64: 6, 32>}, {pipeline_mode = #tpu.pipeline_mode<synchronous>, transform_indices = @transform_6, window_bounds = array<i64: 32, 32>}, {pipeline_mode = #tpu.pipeline_mode<synchronous>, transform_indices = @transform_7, window_bounds = array<i64: 32, 32>}, {pipeline_mode = #tpu.pipeline_mode<synchronous>, transform_indices = @transform_8, window_bounds = array<i64: 5, 32>}, {transform_indices = @transform_9, window_bounds = array<i64: 128, 32>}]} {
    %c0 = arith.constant 0 : index
    %c0_0 = arith.constant 0 : index
    %0 = vector.load %arg1[%c0, %c0_0] : memref<128x30xf32, #tpu.memory_space<vmem>>, vector<128x30xf32>
    %c0_1 = arith.constant 0 : index
    %c0_2 = arith.constant 0 : index
    %1 = vector.load %arg2[%c0_1, %c0_2] : memref<128x2xi32, #tpu.memory_space<vmem>>, vector<128x2xi32>
    %2 = vector.extract_strided_slice %1 {offsets = [0, 0], sizes = [128, 1], strides = [1, 1]} : vector<128x2xi32> to vector<128x1xi32>
    %3 = vector.extract_strided_slice %1 {offsets = [0, 1], sizes = [128, 1], strides = [1, 1]} : vector<128x2xi32> to vector<128x1xi32>
    %c8888_i32 = arith.constant 8888 : i32
    %4 = vector.broadcast %c8888_i32 : i32 to vector<128x1xi32>
    %5 = arith.cmpi eq, %2, %4 : vector<128x1xi32>
    %c8888_i32_3 = arith.constant 8888 : i32
    %6 = vector.broadcast %c8888_i32_3 : i32 to vector<128x1xi32>
    %7 = arith.cmpi eq, %3, %6 : vector<128x1xi32>
    %cst = arith.constant 0.000000e+00 : f32
    %cst_4 = arith.constant 1.000000e+00 : f32
    %8 = vector.broadcast %cst : f32 to vector<128x1xf32>
    %9 = vector.broadcast %cst_4 : f32 to vector<128x1xf32>
    %10 = arith.select %5, %8, %9 : vector<128x1xi1>, vector<128x1xf32>
    %cst_5 = arith.constant 0.000000e+00 : f32
    %cst_6 = arith.constant 1.000000e+00 : f32
    %11 = vector.broadcast %cst_5 : f32 to vector<128x1xf32>
    %12 = vector.broadcast %cst_6 : f32 to vector<128x1xf32>
    %13 = arith.select %7, %11, %12 : vector<128x1xi1>, vector<128x1xf32>
    %c-1_i32 = arith.constant -1 : i32
    %14 = vector.broadcast %c-1_i32 : i32 to vector<128x1xi32>
    %15 = arith.select %5, %14, %2 : vector<128x1xi1>, vector<128x1xi32>
    %c6_i32 = arith.constant 6 : i32
    %16 = vector.broadcast %c6_i32 : i32 to vector<128x1xi32>
    %17 = arith.addi %3, %16 : vector<128x1xi32>
    %c-1_i32_7 = arith.constant -1 : i32
    %18 = vector.broadcast %c-1_i32_7 : i32 to vector<128x1xi32>
    %19 = arith.select %7, %18, %17 : vector<128x1xi1>, vector<128x1xi32>
    %20 = tpu.iota {dimensions = array<i32: 1>} : vector<128x12xi32>
    %21 = vector.broadcast %15 : vector<128x1xi32> to vector<128x12xi32>
    %22 = arith.cmpi eq, %20, %21 : vector<128x12xi32>
    %c6_i32_8 = arith.constant 6 : i32
    %23 = vector.broadcast %c6_i32_8 : i32 to vector<128x12xi32>
    %24 = arith.cmpi slt, %20, %23 : vector<128x12xi32>
    %25 = arith.andi %22, %24 : vector<128x12xi1>
    %26 = vector.broadcast %19 : vector<128x1xi32> to vector<128x12xi32>
    %27 = arith.cmpi eq, %20, %26 : vector<128x12xi32>
    %c6_i32_9 = arith.constant 6 : i32
    %28 = vector.broadcast %c6_i32_9 : i32 to vector<128x12xi32>
    %29 = arith.cmpi sge, %20, %28 : vector<128x12xi32>
    %30 = arith.andi %27, %29 : vector<128x12xi1>
    %31 = arith.ori %25, %30 : vector<128x12xi1>
    %32 = arith.extui %31 : vector<128x12xi1> to vector<128x12xi32>
    %33 = arith.sitofp %32 : vector<128x12xi32> to vector<128x12xf32>
    %34 = vector.extract_strided_slice %0 {offsets = [0, 10], sizes = [128, 6], strides = [1, 1]} : vector<128x30xf32> to vector<128x6xf32>
    %c0_10 = arith.constant 0 : index
    %c0_11 = arith.constant 0 : index
    %35 = vector.load %arg9[%c0_10, %c0_11] : memref<5x32xf32, #tpu.memory_space<vmem>>, vector<5x32xf32>
    %36 = vector.extract_strided_slice %35 {offsets = [0, 0], sizes = [1, 32], strides = [1, 1]} : vector<5x32xf32> to vector<1x32xf32>
    %37 = vector.extract_strided_slice %35 {offsets = [1, 0], sizes = [1, 32], strides = [1, 1]} : vector<5x32xf32> to vector<1x32xf32>
    %38 = vector.extract_strided_slice %35 {offsets = [2, 0], sizes = [1, 32], strides = [1, 1]} : vector<5x32xf32> to vector<1x32xf32>
    %39 = vector.extract_strided_slice %35 {offsets = [3, 0], sizes = [1, 32], strides = [1, 1]} : vector<5x32xf32> to vector<1x32xf32>
    %40 = vector.extract_strided_slice %35 {offsets = [4, 0], sizes = [1, 32], strides = [1, 1]} : vector<5x32xf32> to vector<1x32xf32>
    %c0_12 = arith.constant 0 : index
    %c0_13 = arith.constant 0 : index
    %41 = vector.load %arg3[%c0_12, %c0_13] : memref<30x32xf32, #tpu.memory_space<vmem>>, vector<30x32xf32>
    %cst_14 = arith.constant dense<0.000000e+00> : vector<128x32xf32>
    %42 = tpu.matmul %0, %41, %cst_14 {dimension_numbers = #tpu.dot_dimension_numbers<[1], [0], [0], [1], [0, 0, 1, 1], [], []>} : vector<128x30xf32>, vector<30x32xf32>, vector<128x32xf32> -> vector<128x32xf32>
    %c0_15 = arith.constant 0 : index
    %c0_16 = arith.constant 0 : index
    %43 = vector.load %arg4[%c0_15, %c0_16] : memref<12x32xf32, #tpu.memory_space<vmem>>, vector<12x32xf32>
    %cst_17 = arith.constant dense<0.000000e+00> : vector<128x32xf32>
    %44 = tpu.matmul %33, %43, %cst_17 {dimension_numbers = #tpu.dot_dimension_numbers<[1], [0], [0], [1], [0, 0, 1, 1], [], []>} : vector<128x12xf32>, vector<12x32xf32>, vector<128x32xf32> -> vector<128x32xf32>
    %45 = arith.addf %42, %44 : vector<128x32xf32>
    %46 = vector.broadcast %10 : vector<128x1xf32> to vector<128x6xf32>
    %47 = arith.mulf %34, %46 : vector<128x6xf32>
    %c0_18 = arith.constant 0 : index
    %c0_19 = arith.constant 0 : index
    %48 = vector.load %arg5[%c0_18, %c0_19] : memref<6x32xf32, #tpu.memory_space<vmem>>, vector<6x32xf32>
    %cst_20 = arith.constant dense<0.000000e+00> : vector<128x32xf32>
    %49 = tpu.matmul %47, %48, %cst_20 {dimension_numbers = #tpu.dot_dimension_numbers<[1], [0], [0], [1], [0, 0, 1, 1], [], []>} : vector<128x6xf32>, vector<6x32xf32>, vector<128x32xf32> -> vector<128x32xf32>
    %50 = arith.addf %45, %49 : vector<128x32xf32>
    %51 = vector.broadcast %13 : vector<128x1xf32> to vector<128x6xf32>
    %52 = arith.mulf %34, %51 : vector<128x6xf32>
    %c0_21 = arith.constant 0 : index
    %c0_22 = arith.constant 0 : index
    %53 = vector.load %arg6[%c0_21, %c0_22] : memref<6x32xf32, #tpu.memory_space<vmem>>, vector<6x32xf32>
    %cst_23 = arith.constant dense<0.000000e+00> : vector<128x32xf32>
    %54 = tpu.matmul %52, %53, %cst_23 {dimension_numbers = #tpu.dot_dimension_numbers<[1], [0], [0], [1], [0, 0, 1, 1], [], []>} : vector<128x6xf32>, vector<6x32xf32>, vector<128x32xf32> -> vector<128x32xf32>
    %55 = arith.addf %50, %54 : vector<128x32xf32>
    %56 = vector.broadcast %10 : vector<128x1xf32> to vector<128x32xf32>
    %57 = vector.broadcast %37 : vector<1x32xf32> to vector<128x32xf32>
    %58 = arith.mulf %56, %57 : vector<128x32xf32>
    %59 = arith.addf %55, %58 : vector<128x32xf32>
    %60 = vector.broadcast %13 : vector<128x1xf32> to vector<128x32xf32>
    %61 = vector.broadcast %38 : vector<1x32xf32> to vector<128x32xf32>
    %62 = arith.mulf %60, %61 : vector<128x32xf32>
    %63 = arith.addf %59, %62 : vector<128x32xf32>
    %64 = vector.broadcast %36 : vector<1x32xf32> to vector<128x32xf32>
    %65 = arith.addf %63, %64 : vector<128x32xf32>
    %cst_24 = arith.constant 0.000000e+00 : f32
    %66 = vector.broadcast %cst_24 : f32 to vector<128x32xf32>
    %67 = arith.maximumf %65, %66 : vector<128x32xf32>
    %c0_25 = arith.constant 0 : index
    %c0_26 = arith.constant 0 : index
    %68 = vector.load %arg7[%c0_25, %c0_26] : memref<32x32xf32, #tpu.memory_space<vmem>>, vector<32x32xf32>
    %cst_27 = arith.constant dense<0.000000e+00> : vector<128x32xf32>
    %69 = tpu.matmul %67, %68, %cst_27 {dimension_numbers = #tpu.dot_dimension_numbers<[1], [0], [0], [1], [0, 0, 1, 1], [], []>} : vector<128x32xf32>, vector<32x32xf32>, vector<128x32xf32> -> vector<128x32xf32>
    %70 = vector.broadcast %39 : vector<1x32xf32> to vector<128x32xf32>
    %71 = arith.addf %69, %70 : vector<128x32xf32>
    %72 = arith.addf %71, %67 : vector<128x32xf32>
    %cst_28 = arith.constant 0.000000e+00 : f32
    %73 = vector.broadcast %cst_28 : f32 to vector<128x32xf32>
    %74 = arith.maximumf %72, %73 : vector<128x32xf32>
    %c0_29 = arith.constant 0 : index
    %c0_30 = arith.constant 0 : index
    %75 = vector.load %arg8[%c0_29, %c0_30] : memref<32x32xf32, #tpu.memory_space<vmem>>, vector<32x32xf32>
    %cst_31 = arith.constant dense<0.000000e+00> : vector<128x32xf32>
    %76 = tpu.matmul %74, %75, %cst_31 {dimension_numbers = #tpu.dot_dimension_numbers<[1], [0], [0], [1], [0, 0, 1, 1], [], []>} : vector<128x32xf32>, vector<32x32xf32>, vector<128x32xf32> -> vector<128x32xf32>
    %77 = vector.broadcast %40 : vector<1x32xf32> to vector<128x32xf32>
    %78 = arith.addf %76, %77 : vector<128x32xf32>
    %79 = arith.addf %78, %74 : vector<128x32xf32>
    %cst_32 = arith.constant 0.000000e+00 : f32
    %80 = vector.broadcast %cst_32 : f32 to vector<128x32xf32>
    %81 = arith.maximumf %79, %80 : vector<128x32xf32>
    %c0_33 = arith.constant 0 : index
    %c0_34 = arith.constant 0 : index
    %82 = vector.load %arg10[%c0_33, %c0_34] : memref<128x32xf32, #tpu.memory_space<vmem>>, vector<128x32xf32>
    tpu.vector_store %arg10[%c0_33, %c0_34], %81 {strides = array<i32>} : memref<128x32xf32, #tpu.memory_space<vmem>>, vector<128x32xf32>,
    return
  }
  func.func @transform_0(%arg0: i32) -> (i32, i32) {
    %c0_i32 = arith.constant 0 : i32
    %c0_i32_0 = arith.constant 0 : i32
    return %arg0, %c0_i32 : i32, i32
  }
  func.func @transform_1(%arg0: i32) -> (i32, i32) {
    %c0_i32 = arith.constant 0 : i32
    %c0_i32_0 = arith.constant 0 : i32
    return %arg0, %c0_i32 : i32, i32
  }
  func.func @transform_2(%arg0: i32) -> (i32, i32) {
    %c0_i32 = arith.constant 0 : i32
    %c0_i32_0 = arith.constant 0 : i32
    %c0_i32_1 = arith.constant 0 : i32
    return %c0_i32, %c0_i32_0 : i32, i32
  }
  func.func @transform_3(%arg0: i32) -> (i32, i32) {
    %c0_i32 = arith.constant 0 : i32
    %c0_i32_0 = arith.constant 0 : i32
    %c0_i32_1 = arith.constant 0 : i32
    return %c0_i32, %c0_i32_0 : i32, i32
  }
  func.func @transform_4(%arg0: i32) -> (i32, i32) {
    %c0_i32 = arith.constant 0 : i32
    %c0_i32_0 = arith.constant 0 : i32
    %c0_i32_1 = arith.constant 0 : i32
    return %c0_i32, %c0_i32_0 : i32, i32
  }
  func.func @transform_5(%arg0: i32) -> (i32, i32) {
    %c0_i32 = arith.constant 0 : i32
    %c0_i32_0 = arith.constant 0 : i32
    %c0_i32_1 = arith.constant 0 : i32
    return %c0_i32, %c0_i32_0 : i32, i32
  }
  func.func @transform_6(%arg0: i32) -> (i32, i32) {
    %c0_i32 = arith.constant 0 : i32
    %c0_i32_0 = arith.constant 0 : i32
    %c0_i32_1 = arith.constant 0 : i32
    return %c0_i32, %c0_i32_0 : i32, i32
  }
  func.func @transform_7(%arg0: i32) -> (i32, i32) {
    %c0_i32 = arith.constant 0 : i32
    %c0_i32_0 = arith.constant 0 : i32
    %c0_i32_1 = arith.constant 0 : i32
    return %c0_i32, %c0_i32_0 : i32, i32
  }
  func.func @transform_8(%arg0: i32) -> (i32, i32) {
    %c0_i32 = arith.constant 0 : i32
    %c0_i32_0 = arith.constant 0 : i32
    %c0_i32_1 = arith.constant 0 : i32
    return %c0_i32, %c0_i32_0 : i32, i32
  }
  func.func @transform_9(%arg0: i32) -> (i32, i32) {
    %c0_i32 = arith.constant 0 : i32
    %c0_i32_0 = arith.constant 0 : i32
    return %arg0, %c0_i32 : i32, i32
  }
}

</mosaic_0001>

<llo_original>
// kernel: tpu_custom_call.1
$region0: #{tpu_custom_call.1}
  #allocation0 [shape = 'u32[]', space=smem, size = 0x4, offset = 0x4, fixed_abs, tag = 'smem constant byte address 0x4 - core index']
  #allocation1 [shape = 'u32[72,128]{1,0:T(1,128)}', space=vmem, size = 0x9000, scoped, tag = 'internal scratch']
  %s0 = inlined_call_operand.vmem [shape: f32[256,30], index: 0, kind: input, shape index: {}]
  %s1 = inlined_call_operand.vmem [shape: s32[256,2], index: 1, kind: input, shape index: {}]
  %s2 = inlined_call_operand.vmem [shape: f32[30,32], index: 2, kind: input, shape index: {}]
  %s3 = inlined_call_operand.vmem [shape: f32[12,32], index: 3, kind: input, shape index: {}]
  %s4 = inlined_call_operand.vmem [shape: f32[6,32], index: 4, kind: input, shape index: {}]
  %s5 = inlined_call_operand.vmem [shape: f32[6,32], index: 5, kind: input, shape index: {}]
  %s6 = inlined_call_operand.vmem [shape: f32[32,32], index: 6, kind: input, shape index: {}]
  %s7 = inlined_call_operand.vmem [shape: f32[32,32], index: 7, kind: input, shape index: {}]
  %s8 = inlined_call_operand.vmem [shape: f32[5,32], index: 8, kind: input, shape index: {}]
  %s9 = inlined_call_operand.vmem [shape: f32[256,32], index: 9, kind: output, shape index: {}]
  %s10 = sld [smem:[#allocation0]]
  $region69: #{tpu_custom_call.1} parent=0
    _
  %s12 = ssub.s32 1, %s10
  %s13 = scalar_select 0, %s12, %s10
  loop: start=0, step=1, limit=4
  $region2: #{tpu_custom_call.1} parent=0 // loop_pre_header
    _
  $region3: #{tpu_custom_call.1} parent=0 // loop_header
    %s15 = sphi 0, %s19
    %p16 = scmp.ge.s32.totalorder %s15, 4
    %s25 = sphi 0, %s27
    %s28 = sphi 0, %s25
    %s29 = sphi 0, %s28
    %s45 = sphi 0, %s29
    %s51 = sphi 0, %s53
    %s54 = sphi 0, %s51
    %s55 = sphi 0, %s54
    %s71 = sphi 0, %s55
    %s75 = sphi 0, %s75
    %s77 = sphi 0, %s75
    %s78 = sphi 0, %s77
    %s92 = sphi 0, %s78
    %s96 = sphi 0, %s96
    %s98 = sphi 0, %s96
    %s99 = sphi 0, %s98
    %s113 = sphi 0, %s99
    %s117 = sphi 0, %s117
    %s119 = sphi 0, %s117
    %s120 = sphi 0, %s119
    %s134 = sphi 0, %s120
    %s138 = sphi 0, %s138
    %s140 = sphi 0, %s138
    %s141 = sphi 0, %s140
    %s155 = sphi 0, %s141
    %s159 = sphi 0, %s159
    %s161 = sphi 0, %s159
    %s162 = sphi 0, %s161
    %s176 = sphi 0, %s162
    %s180 = sphi 0, %s180
    %s182 = sphi 0, %s180
    %s183 = sphi 0, %s182
    %s197 = sphi 0, %s183
    %s201 = sphi 0, %s201
    %s203 = sphi 0, %s201
    %s204 = sphi 0, %s203
    %s218 = sphi 0, %s204
    %s224 = sphi 0, %s226
    %s227 = sphi 0, %s224
    %s228 = sphi 0, %s227
    %s244 = sphi 0, %s228
  $region4: #{tpu_custom_call.1} parent=0 // loop_header_branch
    %18 = sbr.rel (%p16) target = $region8
  $region5: #{tpu_custom_call.1} parent=0 // loop_body
    %s20 = ssub.s32 %s15, 1
    %s21 = ssub.s32 %s15, 2
    %s22 = sadd.s32 %s15, 1
    %s23 = ssub.s32 %s15, %s22
    %p24 = scmp.eq.s32.totalorder %s23, 0
    %s26 = sadd.s32 %s25, 1
    %s27 = scalar_select %p24, %s25, %s26
    %p30 = pneg %p24
    %p31 = scmp.eq.s32.totalorder %s15, 1
    %p32 = por %p30, %p31
    %p33 = scmp.ne.s32.totalorder %s25, %s28
    %p34 = scmp.eq.s32.totalorder %s15, 0
    %p35 = por %p33, %p34
    %p36 = scmp.ne.s32.totalorder %s25, %s28
    %p37 = scmp.eq.s32.totalorder %s20, 1
    %p38 = por %p36, %p37
    %p39 = scmp.ne.s32.totalorder %s28, %s29
    %p40 = scmp.eq.s32.totalorder %s20, 0
    %p41 = por %p39, %p40
    %p42 = scmp.ne.s32.totalorder %s28, %s29
    %p43 = scmp.eq.s32.totalorder %s21, 1
    %p44 = por %p42, %p43
    %p46 = scmp.ne.s32.totalorder %s29, %s45
    %p47 = scmp.eq.s32.totalorder %s21, 0
    %p48 = por %p46, %p47
    %s49 = ssub.s32 %s15, %s22
    %p50 = scmp.eq.s32.totalorder %s49, 0
    %s52 = sadd.s32 %s51, 1
    %s53 = scalar_select %p50, %s51, %s52
    %p56 = pneg %p50
    %p57 = scmp.eq.s32.totalorder %s15, 1
    %p58 = por %p56, %p57
    %p59 = scmp.ne.s32.totalorder %s51, %s54
    %p60 = scmp.eq.s32.totalorder %s15, 0
    %p61 = por %p59, %p60
    %p62 = scmp.ne.s32.totalorder %s51, %s54
    %p63 = scmp.eq.s32.totalorder %s20, 1
    %p64 = por %p62, %p63
    %p65 = scmp.ne.s32.totalorder %s54, %s55
    %p66 = scmp.eq.s32.totalorder %s20, 0
    %p67 = por %p65, %p66
    %p68 = scmp.ne.s32.totalorder %s54, %s55
    %p69 = scmp.eq.s32.totalorder %s21, 1
    %p70 = por %p68, %p69
    %p72 = scmp.ne.s32.totalorder %s55, %s71
    %p73 = scmp.eq.s32.totalorder %s21, 0
    %p74 = por %p72, %p73
    %s76 = sadd.s32 %s75, 1
    %p79 = scmp.eq.s32.totalorder %s15, 1
    %p80 = scmp.ne.s32.totalorder %s75, %s77
    %p81 = scmp.eq.s32.totalorder %s15, 0
    %p82 = por %p80, %p81
    %p83 = scmp.ne.s32.totalorder %s75, %s77
    %p84 = scmp.eq.s32.totalorder %s20, 1
    %p85 = por %p83, %p84
    %p86 = scmp.ne.s32.totalorder %s77, %s78
    %p87 = scmp.eq.s32.totalorder %s20, 0
    %p88 = por %p86, %p87
    %p89 = scmp.ne.s32.totalorder %s77, %s78
    %p90 = scmp.eq.s32.totalorder %s21, 1
    %p91 = por %p89, %p90
    %p93 = scmp.ne.s32.totalorder %s78, %s92
    %p94 = scmp.eq.s32.totalorder %s21, 0
    %p95 = por %p93, %p94
    %s97 = sadd.s32 %s96, 1
    %p100 = scmp.eq.s32.totalorder %s15, 1
    %p101 = scmp.ne.s32.totalorder %s96, %s98
    %p102 = scmp.eq.s32.totalorder %s15, 0
    %p103 = por %p101, %p102
    %p104 = scmp.ne.s32.totalorder %s96, %s98
    %p105 = scmp.eq.s32.totalorder %s20, 1
    %p106 = por %p104, %p105
    %p107 = scmp.ne.s32.totalorder %s98, %s99
    %p108 = scmp.eq.s32.totalorder %s20, 0
    %p109 = por %p107, %p108
    %p110 = scmp.ne.s32.totalorder %s98, %s99
    %p111 = scmp.eq.s32.totalorder %s21, 1
    %p112 = por %p110, %p111
    %p114 = scmp.ne.s32.totalorder %s99, %s113
    %p115 = scmp.eq.s32.totalorder %s21, 0
    %p116 = por %p114, %p115
    %s118 = sadd.s32 %s117, 1
    %p121 = scmp.eq.s32.totalorder %s15, 1
    %p122 = scmp.ne.s32.totalorder %s117, %s119
    %p123 = scmp.eq.s32.totalorder %s15, 0
    %p124 = por %p122, %p123
    %p125 = scmp.ne.s32.totalorder %s117, %s119
    %p126 = scmp.eq.s32.totalorder %s20, 1
    %p127 = por %p125, %p126
    %p128 = scmp.ne.s32.totalorder %s119, %s120
    %p129 = scmp.eq.s32.totalorder %s20, 0
    %p130 = por %p128, %p129
    %p131 = scmp.ne.s32.totalorder %s119, %s120
    %p132 = scmp.eq.s32.totalorder %s21, 1
    %p133 = por %p131, %p132
    %p135 = scmp.ne.s32.totalorder %s120, %s134
    %p136 = scmp.eq.s32.totalorder %s21, 0
    %p137 = por %p135, %p136
    %s139 = sadd.s32 %s138, 1
    %p142 = scmp.eq.s32.totalorder %s15, 1
    %p143 = scmp.ne.s32.totalorder %s138, %s140
    %p144 = scmp.eq.s32.totalorder %s15, 0
    %p145 = por %p143, %p144
    %p146 = scmp.ne.s32.totalorder %s138, %s140
    %p147 = scmp.eq.s32.totalorder %s20, 1
    %p148 = por %p146, %p147
    %p149 = scmp.ne.s32.totalorder %s140, %s141
    %p150 = scmp.eq.s32.totalorder %s20, 0
    %p151 = por %p149, %p150
    %p152 = scmp.ne.s32.totalorder %s140, %s141
    %p153 = scmp.eq.s32.totalorder %s21, 1
    %p154 = por %p152, %p153
    %p156 = scmp.ne.s32.totalorder %s141, %s155
    %p157 = scmp.eq.s32.totalorder %s21, 0
    %p158 = por %p156, %p157
    %s160 = sadd.s32 %s159, 1
    %p163 = scmp.eq.s32.totalorder %s15, 1
    %p164 = scmp.ne.s32.totalorder %s159, %s161
    %p165 = scmp.eq.s32.totalorder %s15, 0
    %p166 = por %p164, %p165
    %p167 = scmp.ne.s32.totalorder %s159, %s161
    %p168 = scmp.eq.s32.totalorder %s20, 1
    %p169 = por %p167, %p168
    %p170 = scmp.ne.s32.totalorder %s161, %s162
    %p171 = scmp.eq.s32.totalorder %s20, 0
    %p172 = por %p170, %p171
    %p173 = scmp.ne.s32.totalorder %s161, %s162
    %p174 = scmp.eq.s32.totalorder %s21, 1
    %p175 = por %p173, %p174
    %p177 = scmp.ne.s32.totalorder %s162, %s176
    %p178 = scmp.eq.s32.totalorder %s21, 0
    %p179 = por %p177, %p178
    %s181 = sadd.s32 %s180, 1
    %p184 = scmp.eq.s32.totalorder %s15, 1
    %p185 = scmp.ne.s32.totalorder %s180, %s182
    %p186 = scmp.eq.s32.totalorder %s15, 0
    %p187 = por %p185, %p186
    %p188 = scmp.ne.s32.totalorder %s180, %s182
    %p189 = scmp.eq.s32.totalorder %s20, 1
    %p190 = por %p188, %p189
    %p191 = scmp.ne.s32.totalorder %s182, %s183
    %p192 = scmp.eq.s32.totalorder %s20, 0
    %p193 = por %p191, %p192
    %p194 = scmp.ne.s32.totalorder %s182, %s183
    %p195 = scmp.eq.s32.totalorder %s21, 1
    %p196 = por %p194, %p195
    %p198 = scmp.ne.s32.totalorder %s183, %s197
    %p199 = scmp.eq.s32.totalorder %s21, 0
    %p200 = por %p198, %p199
    %s202 = sadd.s32 %s201, 1
    %p205 = scmp.eq.s32.totalorder %s15, 1
    %p206 = scmp.ne.s32.totalorder %s201, %s203
    %p207 = scmp.eq.s32.totalorder %s15, 0
    %p208 = por %p206, %p207
    %p209 = scmp.ne.s32.totalorder %s201, %s203
    %p210 = scmp.eq.s32.totalorder %s20, 1
    %p211 = por %p209, %p210
    %p212 = scmp.ne.s32.totalorder %s203, %s204
    %p213 = scmp.eq.s32.totalorder %s20, 0
    %p214 = por %p212, %p213
    %p215 = scmp.ne.s32.totalorder %s203, %s204
    %p216 = scmp.eq.s32.totalorder %s21, 1
    %p217 = por %p215, %p216
    %p219 = scmp.ne.s32.totalorder %s204, %s218
    %p220 = scmp.eq.s32.totalorder %s21, 0
    %p221 = por %p219, %p220
    %s222 = ssub.s32 %s15, %s22
    %p223 = scmp.eq.s32.totalorder %s222, 0
    %s225 = sadd.s32 %s224, 1
    %s226 = scalar_select %p223, %s224, %s225
    %p229 = pneg %p223
    %p230 = scmp.eq.s32.totalorder %s15, 1
    %p231 = por %p229, %p230
    %p232 = scmp.ne.s32.totalorder %s224, %s227
    %p233 = scmp.eq.s32.totalorder %s15, 0
    %p234 = por %p232, %p233
    %p235 = scmp.ne.s32.totalorder %s224, %s227
    %p236 = scmp.eq.s32.totalorder %s20, 1
    %p237 = por %p235, %p236
    %p238 = scmp.ne.s32.totalorder %s227, %s228
    %p239 = scmp.eq.s32.totalorder %s20, 0
    %p240 = por %p238, %p239
    %p241 = scmp.ne.s32.totalorder %s227, %s228
    %p242 = scmp.eq.s32.totalorder %s21, 1
    %p243 = por %p241, %p242
    %p245 = scmp.ne.s32.totalorder %s228, %s244
    %p246 = scmp.eq.s32.totalorder %s21, 0
    %p247 = por %p245, %p246
    %p248 = scmp.le.s32.totalorder 1, %s15
    %p249 = scmp.lt.s32.totalorder %s15, 3
    %p250 = pnand %p248, %p249
    %p251 = pneg %p250
    // Predicated region
    $region9: #{tpu_custom_call.1} parent=5 // pred_check
      _
    $region10: #{tpu_custom_call.1} parent=5 // pred_check_branch
      %253 = sbr.rel (%p250) target = $region12
    $region11: #{tpu_custom_call.1} parent=5 // pred_region
      %s254 = ssub.s32 %s15, 1
      // Predicated region
      $region13: #{tpu_custom_call.1} parent=11 // pred_check
        %p255 = pneg %p88
      $region14: #{tpu_custom_call.1} parent=11 // pred_check_branch
        %257 = sbr.rel (%p255) target = $region16
      $region15: #{tpu_custom_call.1} parent=11 // pred_region
        _
      $region16: #{tpu_custom_call.1} parent=11 // pred_fallthru
        _
      // Predicated region
      $region17: #{tpu_custom_call.1} parent=11 // pred_check
        %p258 = pneg %p109
      $region18: #{tpu_custom_call.1} parent=11 // pred_check_branch
        %260 = sbr.rel (%p258) target = $region20
      $region19: #{tpu_custom_call.1} parent=11 // pred_region
        _
      $region20: #{tpu_custom_call.1} parent=11 // pred_fallthru
        _
      // Predicated region
      $region21: #{tpu_custom_call.1} parent=11 // pred_check
        %p261 = pneg %p130
      $region22: #{tpu_custom_call.1} parent=11 // pred_check_branch
        %263 = sbr.rel (%p261) target = $region24
      $region23: #{tpu_custom_call.1} parent=11 // pred_region
        _
      $region24: #{tpu_custom_call.1} parent=11 // pred_fallthru
        _
      // Predicated region
      $region25: #{tpu_custom_call.1} parent=11 // pred_check
        %p264 = pneg %p151
      $region26: #{tpu_custom_call.1} parent=11 // pred_check_branch
        %266 = sbr.rel (%p264) target = $region28
      $region27: #{tpu_custom_call.1} parent=11 // pred_region
        _
      $region28: #{tpu_custom_call.1} parent=11 // pred_fallthru
        _
      // Predicated region
      $region29: #{tpu_custom_call.1} parent=11 // pred_check
        %p267 = pneg %p172
      $region30: #{tpu_custom_call.1} parent=11 // pred_check_branch
        %269 = sbr.rel (%p267) target = $region32
      $region31: #{tpu_custom_call.1} parent=11 // pred_region
        _
      $region32: #{tpu_custom_call.1} parent=11 // pred_fallthru
        _
      // Predicated region
      $region33: #{tpu_custom_call.1} parent=11 // pred_check
        %p270 = pneg %p193
      $region34: #{tpu_custom_call.1} parent=11 // pred_check_branch
        %272 = sbr.rel (%p270) target = $region36
      $region35: #{tpu_custom_call.1} parent=11 // pred_region
        _
      $region36: #{tpu_custom_call.1} parent=11 // pred_fallthru
        _
      // Predicated region
      $region37: #{tpu_custom_call.1} parent=11 // pred_check
        %p273 = pneg %p214
      $region38: #{tpu_custom_call.1} parent=11 // pred_check_branch
        %275 = sbr.rel (%p273) target = $region40
      $region39: #{tpu_custom_call.1} parent=11 // pred_region
        _
      $region40: #{tpu_custom_call.1} parent=11 // pred_fallthru
        _
    $region12: #{tpu_custom_call.1} parent=5 // pred_fallthru
      _
    %p276 = scmp.lt.s32.totalorder %s15, 2
    // Predicated region
    $region41: #{tpu_custom_call.1} parent=5 // pred_check
      %p277 = pneg %p276
    $region42: #{tpu_custom_call.1} parent=5 // pred_check_branch
      %279 = sbr.rel (%p277) target = $region44
    $region43: #{tpu_custom_call.1} parent=5 // pred_region
      // Predicated region
      $region45: #{tpu_custom_call.1} parent=43 // pred_check
        %p280 = pneg %p35
      $region46: #{tpu_custom_call.1} parent=43 // pred_check_branch
        %282 = sbr.rel (%p280) target = $region48
      $region47: #{tpu_custom_call.1} parent=43 // pred_region
        %s283 = smul.u32 16, %s15
        %p284 = scmp.lt.s32.totalorder %s283, 31
        %s285 = scalar_select %p284, %s283, 31
        %s286 = smul.addr %s285, 8
        %s287 = scalar_lea.vmem %s0, %s286
        %s288 = smul.u32 16, %s15
      $region48: #{tpu_custom_call.1} parent=43 // pred_fallthru
        _
      // Predicated region
      $region49: #{tpu_custom_call.1} parent=43 // pred_check
        %p289 = pneg %p61
      $region50: #{tpu_custom_call.1} parent=43 // pred_check_branch
        %291 = sbr.rel (%p289) target = $region52
      $region51: #{tpu_custom_call.1} parent=43 // pred_region
        %s292 = smul.u32 16, %s15
        %p293 = scmp.lt.s32.totalorder %s292, 31
        %s294 = scalar_select %p293, %s292, 31
        %s295 = smul.addr %s294, 8
        %s296 = scalar_lea.vmem %s1, %s295
        %s297 = smul.u32 16, %s15
      $region52: #{tpu_custom_call.1} parent=43 // pred_fallthru
        _
    $region44: #{tpu_custom_call.1} parent=5 // pred_fallthru
      _
    %p298 = scmp.le.s32.totalorder 1, %s15
    %p299 = scmp.lt.s32.totalorder %s15, 3
    %p300 = pnand %p298, %p299
    %p301 = pneg %p300
    // Predicated region
    $region53: #{tpu_custom_call.1} parent=5 // pred_check
      _
    $region54: #{tpu_custom_call.1} parent=5 // pred_check_branch
      %303 = sbr.rel (%p300) target = $region56
    $region55: #{tpu_custom_call.1} parent=5 // pred_region
      %s304 = ssub.s32 %s15, 1
      %s305 = smul.u32 16, %s20
      %p306 = scmp.lt.s32.totalorder %s305, 31
      %s307 = scalar_select %p306, %s305, 31
      %s308 = smul.addr %s307, 8
      %s309 = scalar_lea.vmem %s0, %s308
      %p310 = pneg %p41
      %p311 = pneg %p38
      %s312 = smul.u32 16, %s20
      %p313 = scmp.lt.s32.totalorder %s312, 31
      %s314 = scalar_select %p313, %s312, 31
      %s315 = smul.addr %s314, 8
      %s316 = scalar_lea.vmem %s1, %s315
      %p317 = pneg %p67
      %p318 = pneg %p64
      %p319 = pneg %p88
      %p320 = pneg %p85
      %p321 = pneg %p109
      %p322 = pneg %p106
      %p323 = pneg %p130
      %p324 = pneg %p127
      %p325 = pneg %p151
      %p326 = pneg %p148
      %p327 = pneg %p172
      %p328 = pneg %p169
      %p329 = pneg %p193
      %p330 = pneg %p190
      %p331 = pneg %p214
      %p332 = pneg %p211
      %p333 = pneg %p240
      %p334 = pneg %p237
      %s335 = smul.u32 16, %s20
      %p336 = scmp.lt.s32.totalorder %s335, 31
      %s337 = scalar_select %p336, %s335, 31
      %s338 = smul.addr %s337, 8
      %s339 = scalar_lea.vmem %s9, %s338
      %s340 = smul.u32 16, %s20
      %p341 = scmp.lt.s32.totalorder %s340, 31
      %s342 = scalar_select %p341, %s340, 31
      %s343 = smul.addr %s342, 8
      %s344 = scalar_lea.vmem %s0, %s343
      %s345 = smul.u32 16, %s20
      %s346 = smul.u32 16, %s20
      %p347 = scmp.lt.s32.totalorder %s346, 31
      %s348 = scalar_select %p347, %s346, 31
      %s349 = smul.addr %s348, 8
      %s350 = scalar_lea.vmem %s1, %s349
      %s351 = smul.u32 16, %s20
      %s352 = smul.u32 16, %s20
      %p353 = scmp.lt.s32.totalorder %s352, 31
      %s354 = scalar_select %p353, %s352, 31
      %s355 = smul.addr %s354, 8
      %s356 = scalar_lea.vmem %s9, %s355
      %s357 = smul.u32 16, %s20
      %v358 = vld [vmem:[%s344] sm:$0xff]
      %v359 = vld [vmem:[%s344 + $0x8] sm:$0xff]
      %v360 = vld [vmem:[%s344 + $0x10] sm:$0xff]
      %v361 = vld [vmem:[%s344 + $0x18] sm:$0xff]
      %v362 = vld [vmem:[%s344 + $0x20] sm:$0xff]
      %v363 = vld [vmem:[%s344 + $0x28] sm:$0xff]
      %v364 = vld [vmem:[%s344 + $0x30] sm:$0xff]
      %v365 = vld [vmem:[%s344 + $0x38] sm:$0xff]
      %v366 = vld [vmem:[%s344 + $0x40] sm:$0xff]
      %v367 = vld [vmem:[%s344 + $0x48] sm:$0xff]
      %v368 = vld [vmem:[%s344 + $0x50] sm:$0xff]
      %v369 = vld [vmem:[%s344 + $0x58] sm:$0xff]
      %v370 = vld [vmem:[%s344 + $0x60] sm:$0xff]
      %v371 = vld [vmem:[%s344 + $0x68] sm:$0xff]
      %v372 = vld [vmem:[%s344 + $0x70] sm:$0xff]
      %v373 = vld [vmem:[%s344 + $0x78] sm:$0xff]
      %v374 = vld [vmem:[%s350] sm:$0xff]
      %v375 = vld [vmem:[%s350 + $0x8] sm:$0xff]
      %v376 = vld [vmem:[%s350 + $0x10] sm:$0xff]
      %v377 = vld [vmem:[%s350 + $0x18] sm:$0xff]
      %v378 = vld [vmem:[%s350 + $0x20] sm:$0xff]
      %v379 = vld [vmem:[%s350 + $0x28] sm:$0xff]
      %v380 = vld [vmem:[%s350 + $0x30] sm:$0xff]
      %v381 = vld [vmem:[%s350 + $0x38] sm:$0xff]
      %v382 = vld [vmem:[%s350 + $0x40] sm:$0xff]
      %v383 = vld [vmem:[%s350 + $0x48] sm:$0xff]
      %v384 = vld [vmem:[%s350 + $0x50] sm:$0xff]
      %v385 = vld [vmem:[%s350 + $0x58] sm:$0xff]
      %v386 = vld [vmem:[%s350 + $0x60] sm:$0xff]
      %v387 = vld [vmem:[%s350 + $0x68] sm:$0xff]
      %v388 = vld [vmem:[%s350 + $0x70] sm:$0xff]
      %v389 = vld [vmem:[%s350 + $0x78] sm:$0xff]
      %vm390 = vcmp.eq.s32.totalorder %v374, 8888
      %vm391 = vcmp.eq.s32.totalorder %v375, 8888
      %vm392 = vcmp.eq.s32.totalorder %v376, 8888
      %vm393 = vcmp.eq.s32.totalorder %v377, 8888
      %vm394 = vcmp.eq.s32.totalorder %v378, 8888
      %vm395 = vcmp.eq.s32.totalorder %v379, 8888
      %vm396 = vcmp.eq.s32.totalorder %v380, 8888
      %vm397 = vcmp.eq.s32.totalorder %v381, 8888
      %vm398 = vcmp.eq.s32.totalorder %v382, 8888
      %vm399 = vcmp.eq.s32.totalorder %v383, 8888
      %vm400 = vcmp.eq.s32.totalorder %v384, 8888
      %vm401 = vcmp.eq.s32.totalorder %v385, 8888
      %vm402 = vcmp.eq.s32.totalorder %v386, 8888
      %vm403 = vcmp.eq.s32.totalorder %v387, 8888
      %vm404 = vcmp.eq.s32.totalorder %v388, 8888
      %vm405 = vcmp.eq.s32.totalorder %v389, 8888
      %v406 = vsel %vm390, 0.0, 1.0
      %v407 = vsel %vm391, 0.0, 1.0
      %v408 = vsel %vm392, 0.0, 1.0
      %v409 = vsel %vm393, 0.0, 1.0
      %v410 = vsel %vm394, 0.0, 1.0
      %v411 = vsel %vm395, 0.0, 1.0
      %v412 = vsel %vm396, 0.0, 1.0
      %v413 = vsel %vm397, 0.0, 1.0
      %v414 = vsel %vm398, 0.0, 1.0
      %v415 = vsel %vm399, 0.0, 1.0
      %v416 = vsel %vm400, 0.0, 1.0
      %v417 = vsel %vm401, 0.0, 1.0
      %v418 = vsel %vm402, 0.0, 1.0
      %v419 = vsel %vm403, 0.0, 1.0
      %v420 = vsel %vm404, 0.0, 1.0
      %v421 = vsel %vm405, 0.0, 1.0
      %v422 = vsel %vm390, 4294967295, %v374
      %v423 = vsel %vm391, 4294967295, %v375
      %v424 = vsel %vm392, 4294967295, %v376
      %v425 = vsel %vm393, 4294967295, %v377
      %v426 = vsel %vm394, 4294967295, %v378
      %v427 = vsel %vm395, 4294967295, %v379
      %v428 = vsel %vm396, 4294967295, %v380
      %v429 = vsel %vm397, 4294967295, %v381
      %v430 = vsel %vm398, 4294967295, %v382
      %v431 = vsel %vm399, 4294967295, %v383
      %v432 = vsel %vm400, 4294967295, %v384
      %v433 = vsel %vm401, 4294967295, %v385
      %v434 = vsel %vm402, 4294967295, %v386
      %v435 = vsel %vm403, 4294967295, %v387
      %v436 = vsel %vm404, 4294967295, %v388
      %v437 = vsel %vm405, 4294967295, %v389
      %v438 = vadd.s32 %v374, 6
      %v439 = vadd.s32 %v375, 6
      %v440 = vadd.s32 %v376, 6
      %v441 = vadd.s32 %v377, 6
      %v442 = vadd.s32 %v378, 6
      %v443 = vadd.s32 %v379, 6
      %v444 = vadd.s32 %v380, 6
      %v445 = vadd.s32 %v381, 6
      %v446 = vadd.s32 %v382, 6
      %v447 = vadd.s32 %v383, 6
      %v448 = vadd.s32 %v384, 6
      %v449 = vadd.s32 %v385, 6
      %v450 = vadd.s32 %v386, 6
      %v451 = vadd.s32 %v387, 6
      %v452 = vadd.s32 %v388, 6
      %v453 = vadd.s32 %v389, 6
      %v454 = vsel %vm390, 4294967295, %v438
      %v455 = vsel %vm391, 4294967295, %v439
      %v456 = vsel %vm392, 4294967295, %v440
      %v457 = vsel %vm393, 4294967295, %v441
      %v458 = vsel %vm394, 4294967295, %v442
      %v459 = vsel %vm395, 4294967295, %v443
      %v460 = vsel %vm396, 4294967295, %v444
      %v461 = vsel %vm397, 4294967295, %v445
      %v462 = vsel %vm398, 4294967295, %v446
      %v463 = vsel %vm399, 4294967295, %v447
      %v464 = vsel %vm400, 4294967295, %v448
      %v465 = vsel %vm401, 4294967295, %v449
      %v466 = vsel %vm402, 4294967295, %v450
      %v467 = vsel %vm403, 4294967295, %v451
      %v468 = vsel %vm404, 4294967295, %v452
      %v469 = vsel %vm405, 4294967295, %v453
      %v470 = vlaneseq
      %v471 = vand.u32 %v470, 127
      %472 = vset.pattern.permute.xlu0 0
      %473 = vperm.xlu0 %472, %v422
      %v474 = vpop.permute.xlu0 %473
      %475 = vset.pattern.permute.xlu0 0
      %476 = vperm.xlu0 %475, %v423
      %v477 = vpop.permute.xlu0 %476
      %478 = vset.pattern.permute.xlu0 0
      %479 = vperm.xlu0 %478, %v424
      %v480 = vpop.permute.xlu0 %479
      %481 = vset.pattern.permute.xlu0 0
      %482 = vperm.xlu0 %481, %v425
      %v483 = vpop.permute.xlu0 %482
      %484 = vset.pattern.permute.xlu0 0
      %485 = vperm.xlu0 %484, %v426
      %v486 = vpop.permute.xlu0 %485
      %487 = vset.pattern.permute.xlu0 0
      %488 = vperm.xlu0 %487, %v427
      %v489 = vpop.permute.xlu0 %488
      %490 = vset.pattern.permute.xlu0 0
      %491 = vperm.xlu0 %490, %v428
      %v492 = vpop.permute.xlu0 %491
      %493 = vset.pattern.permute.xlu0 0
      %494 = vperm.xlu0 %493, %v429
      %v495 = vpop.permute.xlu0 %494
      %496 = vset.pattern.permute.xlu0 0
      %497 = vperm.xlu0 %496, %v430
      %v498 = vpop.permute.xlu0 %497
      %499 = vset.pattern.permute.xlu0 0
      %500 = vperm.xlu0 %499, %v431
      %v501 = vpop.permute.xlu0 %500
      %502 = vset.pattern.permute.xlu0 0
      %503 = vperm.xlu0 %502, %v432
      %v504 = vpop.permute.xlu0 %503
      %505 = vset.pattern.permute.xlu0 0
      %506 = vperm.xlu0 %505, %v433
      %v507 = vpop.permute.xlu0 %506
      %508 = vset.pattern.permute.xlu0 0
      %509 = vperm.xlu0 %508, %v434
      %v510 = vpop.permute.xlu0 %509
      %511 = vset.pattern.permute.xlu0 0
      %512 = vperm.xlu0 %511, %v435
      %v513 = vpop.permute.xlu0 %512
      %514 = vset.pattern.permute.xlu0 0
      %515 = vperm.xlu0 %514, %v436
      %v516 = vpop.permute.xlu0 %515
      %517 = vset.pattern.permute.xlu0 0
      %518 = vperm.xlu0 %517, %v437
      %v519 = vpop.permute.xlu0 %518
      %vm520 = vcmp.eq.s32.totalorder %v471, %v474
      %vm521 = vcmp.eq.s32.totalorder %v471, %v477
      %vm522 = vcmp.eq.s32.totalorder %v471, %v480
      %vm523 = vcmp.eq.s32.totalorder %v471, %v483
      %vm524 = vcmp.eq.s32.totalorder %v471, %v486
      %vm525 = vcmp.eq.s32.totalorder %v471, %v489
      %vm526 = vcmp.eq.s32.totalorder %v471, %v492
      %vm527 = vcmp.eq.s32.totalorder %v471, %v495
      %vm528 = vcmp.eq.s32.totalorder %v471, %v498
      %vm529 = vcmp.eq.s32.totalorder %v471, %v501
      %vm530 = vcmp.eq.s32.totalorder %v471, %v504
      %vm531 = vcmp.eq.s32.totalorder %v471, %v507
      %vm532 = vcmp.eq.s32.totalorder %v471, %v510
      %vm533 = vcmp.eq.s32.totalorder %v471, %v513
      %vm534 = vcmp.eq.s32.totalorder %v471, %v516
      %vm535 = vcmp.eq.s32.totalorder %v471, %v519
      %vm536 = vcmp.lt.s32.totalorder %v471, 6
      %vm537 = vmand %vm520, %vm536
      %vm538 = vmand %vm521, %vm536
      %vm539 = vmand %vm522, %vm536
      %vm540 = vmand %vm523, %vm536
      %vm541 = vmand %vm524, %vm536
      %vm542 = vmand %vm525, %vm536
      %vm543 = vmand %vm526, %vm536
      %vm544 = vmand %vm527, %vm536
      %vm545 = vmand %vm528, %vm536
      %vm546 = vmand %vm529, %vm536
      %vm547 = vmand %vm530, %vm536
      %vm548 = vmand %vm531, %vm536
      %vm549 = vmand %vm532, %vm536
      %vm550 = vmand %vm533, %vm536
      %vm551 = vmand %vm534, %vm536
      %vm552 = vmand %vm535, %vm536
      %553 = vset.pattern.permute.xlu0 1
      %554 = vperm.xlu0 %553, %v454
      %v555 = vpop.permute.xlu0 %554
      %556 = vset.pattern.permute.xlu0 1
      %557 = vperm.xlu0 %556, %v455
      %v558 = vpop.permute.xlu0 %557
      %559 = vset.pattern.permute.xlu0 1
      %560 = vperm.xlu0 %559, %v456
      %v561 = vpop.permute.xlu0 %560
      %562 = vset.pattern.permute.xlu0 1
      %563 = vperm.xlu0 %562, %v457
      %v564 = vpop.permute.xlu0 %563
      %565 = vset.pattern.permute.xlu0 1
      %566 = vperm.xlu0 %565, %v458
      %v567 = vpop.permute.xlu0 %566
      %568 = vset.pattern.permute.xlu0 1
      %569 = vperm.xlu0 %568, %v459
      %v570 = vpop.permute.xlu0 %569
      %571 = vset.pattern.permute.xlu0 1
      %572 = vperm.xlu0 %571, %v460
      %v573 = vpop.permute.xlu0 %572
      %574 = vset.pattern.permute.xlu0 1
      %575 = vperm.xlu0 %574, %v461
      %v576 = vpop.permute.xlu0 %575
      %577 = vset.pattern.permute.xlu0 1
      %578 = vperm.xlu0 %577, %v462
      %v579 = vpop.permute.xlu0 %578
      %580 = vset.pattern.permute.xlu0 1
      %581 = vperm.xlu0 %580, %v463
      %v582 = vpop.permute.xlu0 %581
      %583 = vset.pattern.permute.xlu0 1
      %584 = vperm.xlu0 %583, %v464
      %v585 = vpop.permute.xlu0 %584
      %586 = vset.pattern.permute.xlu0 1
      %587 = vperm.xlu0 %586, %v465
      %v588 = vpop.permute.xlu0 %587
      %589 = vset.pattern.permute.xlu0 1
      %590 = vperm.xlu0 %589, %v466
      %v591 = vpop.permute.xlu0 %590
      %592 = vset.pattern.permute.xlu0 1
      %593 = vperm.xlu0 %592, %v467
      %v594 = vpop.permute.xlu0 %593
      %595 = vset.pattern.permute.xlu0 1
      %596 = vperm.xlu0 %595, %v468
      %v597 = vpop.permute.xlu0 %596
      %598 = vset.pattern.permute.xlu0 1
      %599 = vperm.xlu0 %598, %v469
      %v600 = vpop.permute.xlu0 %599
      %vm601 = vcmp.eq.s32.totalorder %v471, %v555
      %vm602 = vcmp.eq.s32.totalorder %v471, %v558
      %vm603 = vcmp.eq.s32.totalorder %v471, %v561
      %vm604 = vcmp.eq.s32.totalorder %v471, %v564
      %vm605 = vcmp.eq.s32.totalorder %v471, %v567
      %vm606 = vcmp.eq.s32.totalorder %v471, %v570
      %vm607 = vcmp.eq.s32.totalorder %v471, %v573
      %vm608 = vcmp.eq.s32.totalorder %v471, %v576
      %vm609 = vcmp.eq.s32.totalorder %v471, %v579
      %vm610 = vcmp.eq.s32.totalorder %v471, %v582
      %vm611 = vcmp.eq.s32.totalorder %v471, %v585
      %vm612 = vcmp.eq.s32.totalorder %v471, %v588
      %vm613 = vcmp.eq.s32.totalorder %v471, %v591
      %vm614 = vcmp.eq.s32.totalorder %v471, %v594
      %vm615 = vcmp.eq.s32.totalorder %v471, %v597
      %vm616 = vcmp.eq.s32.totalorder %v471, %v600
      %vm617 = vcmp.ge.s32.totalorder %v471, 6
      %vm618 = vmand %vm601, %vm617
      %vm619 = vmand %vm602, %vm617
      %vm620 = vmand %vm603, %vm617
      %vm621 = vmand %vm604, %vm617
      %vm622 = vmand %vm605, %vm617
      %vm623 = vmand %vm606, %vm617
      %vm624 = vmand %vm607, %vm617
      %vm625 = vmand %vm608, %vm617
      %vm626 = vmand %vm609, %vm617
      %vm627 = vmand %vm610, %vm617
      %vm628 = vmand %vm611, %vm617
      %vm629 = vmand %vm612, %vm617
      %vm630 = vmand %vm613, %vm617
      %vm631 = vmand %vm614, %vm617
      %vm632 = vmand %vm615, %vm617
      %vm633 = vmand %vm616, %vm617
      %vm634 = vmor %vm537, %vm618
      %vm635 = vmor %vm538, %vm619
      %vm636 = vmor %vm539, %vm620
      %vm637 = vmor %vm540, %vm621
      %vm638 = vmor %vm541, %vm622
      %vm639 = vmor %vm542, %vm623
      %vm640 = vmor %vm543, %vm624
      %vm641 = vmor %vm544, %vm625
      %vm642 = vmor %vm545, %vm626
      %vm643 = vmor %vm546, %vm627
      %vm644 = vmor %vm547, %vm628
      %vm645 = vmor %vm548, %vm629
      %vm646 = vmor %vm549, %vm630
      %vm647 = vmor %vm550, %vm631
      %vm648 = vmor %vm551, %vm632
      %vm649 = vmor %vm552, %vm633
      %v650 = vsel %vm634, 1, 0
      %v651 = vsel %vm635, 1, 0
      %v652 = vsel %vm636, 1, 0
      %v653 = vsel %vm637, 1, 0
      %v654 = vsel %vm638, 1, 0
      %v655 = vsel %vm639, 1, 0
      %v656 = vsel %vm640, 1, 0
      %v657 = vsel %vm641, 1, 0
      %v658 = vsel %vm642, 1, 0
      %v659 = vsel %vm643, 1, 0
      %v660 = vsel %vm644, 1, 0
      %v661 = vsel %vm645, 1, 0
      %v662 = vsel %vm646, 1, 0
      %v663 = vsel %vm647, 1, 0
      %v664 = vsel %vm648, 1, 0
      %v665 = vsel %vm649, 1, 0
      %v666 = vcvt.s32.f32 %v650
      %v667 = vcvt.s32.f32 %v651
      %v668 = vcvt.s32.f32 %v652
      %v669 = vcvt.s32.f32 %v653
      %v670 = vcvt.s32.f32 %v654
      %v671 = vcvt.s32.f32 %v655
      %v672 = vcvt.s32.f32 %v656
      %v673 = vcvt.s32.f32 %v657
      %v674 = vcvt.s32.f32 %v658
      %v675 = vcvt.s32.f32 %v659
      %v676 = vcvt.s32.f32 %v660
      %v677 = vcvt.s32.f32 %v661
      %v678 = vcvt.s32.f32 %v662
      %v679 = vcvt.s32.f32 %v663
      %v680 = vcvt.s32.f32 %v664
      %v681 = vcvt.s32.f32 %v665
      %v682 = vld [vmem:[%s8] sm:$0x1f]
      %v683 = vld [vmem:[%s2] sm:$0xff]
      %v684 = vld [vmem:[%s2 + $0x8] sm:$0xff]
      %v685 = vld [vmem:[%s2 + $0x10] sm:$0xff]
      %v686 = vld [vmem:[%s2 + $0x18] sm:$0x3f]
      %v687 = vld [vmem:[%s3] sm:$0xff]
      %v688 = vld [vmem:[%s3 + $0x8] sm:$0xf]
      %vm689 = vcmask 97280
      %v691 = vsel %vm689, %v666, 0
      %v694 = vsel %vm689, %v667, 0
      %v697 = vsel %vm689, %v668, 0
      %v700 = vsel %vm689, %v669, 0
      %v703 = vsel %vm689, %v670, 0
      %v706 = vsel %vm689, %v671, 0
      %v709 = vsel %vm689, %v672, 0
      %v712 = vsel %vm689, %v673, 0
      %v715 = vsel %vm689, %v674, 0
      %v718 = vsel %vm689, %v675, 0
      %v721 = vsel %vm689, %v676, 0
      %v724 = vsel %vm689, %v677, 0
      %v727 = vsel %vm689, %v678, 0
      %v730 = vsel %vm689, %v679, 0
      %v733 = vsel %vm689, %v680, 0
      %v736 = vsel %vm689, %v681, 0
      %vm738 = vcmask 1043456
      %v740 = vsel %vm738, %v688, 0
      %742 = vmatpush.msra.mxu0 0.0
      %743 = vmatpush.msra.mxu0 0.0
      %744 = vmatpush.msra.mxu0 0.0
      %745 = vmatpush.msra.mxu0 0.0
      %746 = vmatpush.msra.mxu0 0.0
      %747 = vmatpush.msra.mxu0 0.0
      %748 = vmatpush.msra.mxu0 0.0
      %749 = vmatpush.msra.mxu0 0.0
      %750 = vmatpush.msra.mxu0 0.0
      %751 = vmatpush.msra.mxu0 0.0
      %752 = vmatpush.msra.mxu0 0.0
      %753 = vmatpush.msra.mxu0 0.0
      %754 = vmatpush.msra.mxu0 0.0
      %755 = vmatpush.msra.mxu0 0.0
      %756 = vmatpush.msra.mxu0 %v740
      %757 = vmatpush.msra.mxu0 %v687
      %758 = vmatmul.f32.gmra.mxu0 %v691
      %v759 = vpop.f32.mrf.mxu0
      %v760 = vadd.f32 0.0, %v759
      %761 = vmatmul.f32.gmra.mxu0 %v694
      %v762 = vpop.f32.mrf.mxu0
      %v763 = vadd.f32 0.0, %v762
      %764 = vmatmul.f32.gmra.mxu0 %v697
      %v765 = vpop.f32.mrf.mxu0
      %v766 = vadd.f32 0.0, %v765
      %767 = vmatmul.f32.gmra.mxu0 %v700
      %v768 = vpop.f32.mrf.mxu0
      %v769 = vadd.f32 0.0, %v768
      %770 = vmatmul.f32.gmra.mxu0 %v703
      %v771 = vpop.f32.mrf.mxu0
      %v772 = vadd.f32 0.0, %v771
      %773 = vmatmul.f32.gmra.mxu0 %v706
      %v774 = vpop.f32.mrf.mxu0
      %v775 = vadd.f32 0.0, %v774
      %776 = vmatmul.f32.gmra.mxu0 %v709
      %v777 = vpop.f32.mrf.mxu0
      %v778 = vadd.f32 0.0, %v777
      %779 = vmatmul.f32.gmra.mxu0 %v712
      %v780 = vpop.f32.mrf.mxu0
      %v781 = vadd.f32 0.0, %v780
      %782 = vmatmul.f32.gmra.mxu0 %v715
      %v783 = vpop.f32.mrf.mxu0
      %v784 = vadd.f32 0.0, %v783
      %785 = vmatmul.f32.gmra.mxu0 %v718
      %v786 = vpop.f32.mrf.mxu0
      %v787 = vadd.f32 0.0, %v786
      %788 = vmatmul.f32.gmra.mxu0 %v721
      %v789 = vpop.f32.mrf.mxu0
      %v790 = vadd.f32 0.0, %v789
      %791 = vmatmul.f32.gmra.mxu0 %v724
      %v792 = vpop.f32.mrf.mxu0
      %v793 = vadd.f32 0.0, %v792
      %794 = vmatmul.f32.gmra.mxu0 %v727
      %v795 = vpop.f32.mrf.mxu0
      %v796 = vadd.f32 0.0, %v795
      %797 = vmatmul.f32.gmra.mxu0 %v730
      %v798 = vpop.f32.mrf.mxu0
      %v799 = vadd.f32 0.0, %v798
      %800 = vmatmul.f32.gmra.mxu0 %v733
      %v801 = vpop.f32.mrf.mxu0
      %v802 = vadd.f32 0.0, %v801
      %803 = vmatmul.f32.gmra.mxu0 %v736
      %v804 = vpop.f32.mrf.mxu0
      %v805 = vadd.f32 0.0, %v804
      %806 = vdwg.mxu0
      %vm807 = vcmask 244736
      %v809 = vsel %vm807, %v358, 0
      %v812 = vsel %vm807, %v359, 0
      %v815 = vsel %vm807, %v360, 0
      %v818 = vsel %vm807, %v361, 0
      %v821 = vsel %vm807, %v362, 0
      %v824 = vsel %vm807, %v363, 0
      %v827 = vsel %vm807, %v364, 0
      %v830 = vsel %vm807, %v365, 0
      %v833 = vsel %vm807, %v366, 0
      %v836 = vsel %vm807, %v367, 0
      %v839 = vsel %vm807, %v368, 0
      %v842 = vsel %vm807, %v369, 0
      %v845 = vsel %vm807, %v370, 0
      %v848 = vsel %vm807, %v371, 0
      %v851 = vsel %vm807, %v372, 0
      %v854 = vsel %vm807, %v373, 0
      %vm856 = vcmask 1045504
      %v858 = vsel %vm856, %v686, 0
      %860 = vmatpush.msra.mxu0 0.0
      %861 = vmatpush.msra.mxu0 0.0
      %862 = vmatpush.msra.mxu0 0.0
      %863 = vmatpush.msra.mxu0 0.0
      %864 = vmatpush.msra.mxu0 0.0
      %865 = vmatpush.msra.mxu0 0.0
      %866 = vmatpush.msra.mxu0 0.0
      %867 = vmatpush.msra.mxu0 0.0
      %868 = vmatpush.msra.mxu0 0.0
      %869 = vmatpush.msra.mxu0 0.0
      %870 = vmatpush.msra.mxu0 0.0
      %871 = vmatpush.msra.mxu0 0.0
      %872 = vmatpush.msra.mxu0 %v858
      %873 = vmatpush.msra.mxu0 %v685
      %874 = vmatpush.msra.mxu0 %v684
      %875 = vmatpush.msra.mxu0 %v683
      %876 = vmatmul.f32.gmra.mxu0 %v809
      %v877 = vpop.f32.mrf.mxu0
      %v878 = vadd.f32 %v760, %v877
      %879 = vmatmul.f32.gmra.mxu0 %v812
      %v880 = vpop.f32.mrf.mxu0
      %v881 = vadd.f32 %v763, %v880
      %882 = vmatmul.f32.gmra.mxu0 %v815
      %v883 = vpop.f32.mrf.mxu0
      %v884 = vadd.f32 %v766, %v883
      %885 = vmatmul.f32.gmra.mxu0 %v818
      %v886 = vpop.f32.mrf.mxu0
      %v887 = vadd.f32 %v769, %v886
      %888 = vmatmul.f32.gmra.mxu0 %v821
      %v889 = vpop.f32.mrf.mxu0
      %v890 = vadd.f32 %v772, %v889
      %891 = vmatmul.f32.gmra.mxu0 %v824
      %v892 = vpop.f32.mrf.mxu0
      %v893 = vadd.f32 %v775, %v892
      %894 = vmatmul.f32.gmra.mxu0 %v827
      %v895 = vpop.f32.mrf.mxu0
      %v896 = vadd.f32 %v778, %v895
      %897 = vmatmul.f32.gmra.mxu0 %v830
      %v898 = vpop.f32.mrf.mxu0
      %v899 = vadd.f32 %v781, %v898
      %900 = vmatmul.f32.gmra.mxu0 %v833
      %v901 = vpop.f32.mrf.mxu0
      %v902 = vadd.f32 %v784, %v901
      %903 = vmatmul.f32.gmra.mxu0 %v836
      %v904 = vpop.f32.mrf.mxu0
      %v905 = vadd.f32 %v787, %v904
      %906 = vmatmul.f32.gmra.mxu0 %v839
      %v907 = vpop.f32.mrf.mxu0
      %v908 = vadd.f32 %v790, %v907
      %909 = vmatmul.f32.gmra.mxu0 %v842
      %v910 = vpop.f32.mrf.mxu0
      %v911 = vadd.f32 %v793, %v910
      %912 = vmatmul.f32.gmra.mxu0 %v845
      %v913 = vpop.f32.mrf.mxu0
      %v914 = vadd.f32 %v796, %v913
      %915 = vmatmul.f32.gmra.mxu0 %v848
      %v916 = vpop.f32.mrf.mxu0
      %v917 = vadd.f32 %v799, %v916
      %918 = vmatmul.f32.gmra.mxu0 %v851
      %v919 = vpop.f32.mrf.mxu0
      %v920 = vadd.f32 %v802, %v919
      %921 = vmatmul.f32.gmra.mxu0 %v854
      %v922 = vpop.f32.mrf.mxu0
      %v923 = vadd.f32 %v805, %v922
      %924 = vdwg.mxu0
      %926 = vset.pattern.permute.xlu0 0
      %927 = vperm.xlu0 %926, %v406
      %v928 = vpop.permute.xlu0 %927
      %931 = vset.pattern.permute.xlu0 0
      %932 = vperm.xlu0 %931, %v407
      %v933 = vpop.permute.xlu0 %932
      %936 = vset.pattern.permute.xlu0 0
      %937 = vperm.xlu0 %936, %v408
      %v938 = vpop.permute.xlu0 %937
      %941 = vset.pattern.permute.xlu0 0
      %942 = vperm.xlu0 %941, %v409
      %v943 = vpop.permute.xlu0 %942
      %946 = vset.pattern.permute.xlu0 0
      %947 = vperm.xlu0 %946, %v410
      %v948 = vpop.permute.xlu0 %947
      %951 = vset.pattern.permute.xlu0 0
      %952 = vperm.xlu0 %951, %v411
      %v953 = vpop.permute.xlu0 %952
      %956 = vset.pattern.permute.xlu0 0
      %957 = vperm.xlu0 %956, %v412
      %v958 = vpop.permute.xlu0 %957
      %961 = vset.pattern.permute.xlu0 0
      %962 = vperm.xlu0 %961, %v413
      %v963 = vpop.permute.xlu0 %962
      %966 = vset.pattern.permute.xlu0 0
      %967 = vperm.xlu0 %966, %v414
      %v968 = vpop.permute.xlu0 %967
      %971 = vset.pattern.permute.xlu0 0
      %972 = vperm.xlu0 %971, %v415
      %v973 = vpop.permute.xlu0 %972
      %976 = vset.pattern.permute.xlu0 0
      %977 = vperm.xlu0 %976, %v416
      %v978 = vpop.permute.xlu0 %977
      %981 = vset.pattern.permute.xlu0 0
      %982 = vperm.xlu0 %981, %v417
      %v983 = vpop.permute.xlu0 %982
      %986 = vset.pattern.permute.xlu0 0
      %987 = vperm.xlu0 %986, %v418
      %v988 = vpop.permute.xlu0 %987
      %991 = vset.pattern.permute.xlu0 0
      %992 = vperm.xlu0 %991, %v419
      %v993 = vpop.permute.xlu0 %992
      %996 = vset.pattern.permute.xlu0 0
      %997 = vperm.xlu0 %996, %v420
      %v998 = vpop.permute.xlu0 %997
      %1001 = vset.pattern.permute.xlu0 0
      %1002 = vperm.xlu0 %1001, %v421
      %v1003 = vpop.permute.xlu0 %1002
      %v1005 = vmul.f32 %v358, %v928
      %v1006 = vmul.f32 %v359, %v933
      %v1007 = vmul.f32 %v360, %v938
      %v1008 = vmul.f32 %v361, %v943
      %v1009 = vmul.f32 %v362, %v948
      %v1010 = vmul.f32 %v363, %v953
      %v1011 = vmul.f32 %v364, %v958
      %v1012 = vmul.f32 %v365, %v963
      %v1013 = vmul.f32 %v366, %v968
      %v1014 = vmul.f32 %v367, %v973
      %v1015 = vmul.f32 %v368, %v978
      %v1016 = vmul.f32 %v369, %v983
      %v1017 = vmul.f32 %v370, %v988
      %v1018 = vmul.f32 %v371, %v993
      %v1019 = vmul.f32 %v372, %v998
      %v1020 = vmul.f32 %v373, %v1003
      %v1021 = vld [vmem:[%s4] sm:$0x3f]
      %1038 = vrot.lane.b32.xlu0 %v1005, 118
      %v1039 = vpop.permute.xlu0 %1038
      %1040 = vrot.lane.b32.xlu0 %v1006, 118
      %v1041 = vpop.permute.xlu0 %1040
      %1042 = vrot.lane.b32.xlu0 %v1007, 118
      %v1043 = vpop.permute.xlu0 %1042
      %1044 = vrot.lane.b32.xlu0 %v1008, 118
      %v1045 = vpop.permute.xlu0 %1044
      %1046 = vrot.lane.b32.xlu0 %v1009, 118
      %v1047 = vpop.permute.xlu0 %1046
      %1048 = vrot.lane.b32.xlu0 %v1010, 118
      %v1049 = vpop.permute.xlu0 %1048
      %1050 = vrot.lane.b32.xlu0 %v1011, 118
      %v1051 = vpop.permute.xlu0 %1050
      %1052 = vrot.lane.b32.xlu0 %v1012, 118
      %v1053 = vpop.permute.xlu0 %1052
      %1054 = vrot.lane.b32.xlu0 %v1013, 118
      %v1055 = vpop.permute.xlu0 %1054
      %1056 = vrot.lane.b32.xlu0 %v1014, 118
      %v1057 = vpop.permute.xlu0 %1056
      %1058 = vrot.lane.b32.xlu0 %v1015, 118
      %v1059 = vpop.permute.xlu0 %1058
      %1060 = vrot.lane.b32.xlu0 %v1016, 118
      %v1061 = vpop.permute.xlu0 %1060
      %1062 = vrot.lane.b32.xlu0 %v1017, 118
      %v1063 = vpop.permute.xlu0 %1062
      %1064 = vrot.lane.b32.xlu0 %v1018, 118
      %v1065 = vpop.permute.xlu0 %1064
      %1066 = vrot.lane.b32.xlu0 %v1019, 118
      %v1067 = vpop.permute.xlu0 %1066
      %1068 = vrot.lane.b32.xlu0 %v1020, 118
      %v1069 = vpop.permute.xlu0 %1068
      %vm1070 = vcmask 48128
      %v1071 = vsel %vm1070, %v1039, 0
      %v1073 = vsel %vm1070, %v1041, 0
      %v1075 = vsel %vm1070, %v1043, 0
      %v1077 = vsel %vm1070, %v1045, 0
      %v1079 = vsel %vm1070, %v1047, 0
      %v1081 = vsel %vm1070, %v1049, 0
      %v1083 = vsel %vm1070, %v1051, 0
      %v1085 = vsel %vm1070, %v1053, 0
      %v1087 = vsel %vm1070, %v1055, 0
      %v1089 = vsel %vm1070, %v1057, 0
      %v1091 = vsel %vm1070, %v1059, 0
      %v1093 = vsel %vm1070, %v1061, 0
      %v1095 = vsel %vm1070, %v1063, 0
      %v1097 = vsel %vm1070, %v1065, 0
      %v1099 = vsel %vm1070, %v1067, 0
      %v1101 = vsel %vm1070, %v1069, 0
      %v1104 = vsel %vm856, %v1021, 0
      %1106 = vmatpush.msra.mxu0 0.0
      %1107 = vmatpush.msra.mxu0 0.0
      %1108 = vmatpush.msra.mxu0 0.0
      %1109 = vmatpush.msra.mxu0 0.0
      %1110 = vmatpush.msra.mxu0 0.0
      %1111 = vmatpush.msra.mxu0 0.0
      %1112 = vmatpush.msra.mxu0 0.0
      %1113 = vmatpush.msra.mxu0 0.0
      %1114 = vmatpush.msra.mxu0 0.0
      %1115 = vmatpush.msra.mxu0 0.0
      %1116 = vmatpush.msra.mxu0 0.0
      %1117 = vmatpush.msra.mxu0 0.0
      %1118 = vmatpush.msra.mxu0 0.0
      %1119 = vmatpush.msra.mxu0 0.0
      %1120 = vmatpush.msra.mxu0 0.0
      %1121 = vmatpush.msra.mxu0 %v1104
      %1122 = vmatmul.f32.gmra.mxu0 %v1071
      %v1123 = vpop.f32.mrf.mxu0
      %v1124 = vadd.f32 0.0, %v1123
      %1125 = vmatmul.f32.gmra.mxu0 %v1073
      %v1126 = vpop.f32.mrf.mxu0
      %v1127 = vadd.f32 0.0, %v1126
      %1128 = vmatmul.f32.gmra.mxu0 %v1075
      %v1129 = vpop.f32.mrf.mxu0
      %v1130 = vadd.f32 0.0, %v1129
      %1131 = vmatmul.f32.gmra.mxu0 %v1077
      %v1132 = vpop.f32.mrf.mxu0
      %v1133 = vadd.f32 0.0, %v1132
      %1134 = vmatmul.f32.gmra.mxu0 %v1079
      %v1135 = vpop.f32.mrf.mxu0
      %v1136 = vadd.f32 0.0, %v1135
      %1137 = vmatmul.f32.gmra.mxu0 %v1081
      %v1138 = vpop.f32.mrf.mxu0
      %v1139 = vadd.f32 0.0, %v1138
      %1140 = vmatmul.f32.gmra.mxu0 %v1083
      %v1141 = vpop.f32.mrf.mxu0
      %v1142 = vadd.f32 0.0, %v1141
      %1143 = vmatmul.f32.gmra.mxu0 %v1085
      %v1144 = vpop.f32.mrf.mxu0
      %v1145 = vadd.f32 0.0, %v1144
      %1146 = vmatmul.f32.gmra.mxu0 %v1087
      %v1147 = vpop.f32.mrf.mxu0
      %v1148 = vadd.f32 0.0, %v1147
      %1149 = vmatmul.f32.gmra.mxu0 %v1089
      %v1150 = vpop.f32.mrf.mxu0
      %v1151 = vadd.f32 0.0, %v1150
      %1152 = vmatmul.f32.gmra.mxu0 %v1091
      %v1153 = vpop.f32.mrf.mxu0
      %v1154 = vadd.f32 0.0, %v1153
      %1155 = vmatmul.f32.gmra.mxu0 %v1093
      %v1156 = vpop.f32.mrf.mxu0
      %v1157 = vadd.f32 0.0, %v1156
      %1158 = vmatmul.f32.gmra.mxu0 %v1095
      %v1159 = vpop.f32.mrf.mxu0
      %v1160 = vadd.f32 0.0, %v1159
      %1161 = vmatmul.f32.gmra.mxu0 %v1097
      %v1162 = vpop.f32.mrf.mxu0
      %v1163 = vadd.f32 0.0, %v1162
      %1164 = vmatmul.f32.gmra.mxu0 %v1099
      %v1165 = vpop.f32.mrf.mxu0
      %v1166 = vadd.f32 0.0, %v1165
      %1167 = vmatmul.f32.gmra.mxu0 %v1101
      %v1168 = vpop.f32.mrf.mxu0
      %v1169 = vadd.f32 0.0, %v1168
      %1170 = vdwg.mxu0
      %v1171 = vadd.f32 %v878, %v1124
      %v1172 = vadd.f32 %v881, %v1127
      %v1173 = vadd.f32 %v884, %v1130
      %v1174 = vadd.f32 %v887, %v1133
      %v1175 = vadd.f32 %v890, %v1136
      %v1176 = vadd.f32 %v893, %v1139
      %v1177 = vadd.f32 %v896, %v1142
      %v1178 = vadd.f32 %v899, %v1145
      %v1179 = vadd.f32 %v902, %v1148
      %v1180 = vadd.f32 %v905, %v1151
      %v1181 = vadd.f32 %v908, %v1154
      %v1182 = vadd.f32 %v911, %v1157
      %v1183 = vadd.f32 %v914, %v1160
      %v1184 = vadd.f32 %v917, %v1163
      %v1185 = vadd.f32 %v920, %v1166
      %v1186 = vadd.f32 %v923, %v1169
      %1187 = vset.pattern.permute.xlu0 1
      %1188 = vperm.xlu0 %1187, %v406
      %v1189 = vpop.permute.xlu0 %1188
      %1191 = vset.pattern.permute.xlu0 1
      %1192 = vperm.xlu0 %1191, %v407
      %v1193 = vpop.permute.xlu0 %1192
      %1195 = vset.pattern.permute.xlu0 1
      %1196 = vperm.xlu0 %1195, %v408
      %v1197 = vpop.permute.xlu0 %1196
      %1199 = vset.pattern.permute.xlu0 1
      %1200 = vperm.xlu0 %1199, %v409
      %v1201 = vpop.permute.xlu0 %1200
      %1203 = vset.pattern.permute.xlu0 1
      %1204 = vperm.xlu0 %1203, %v410
      %v1205 = vpop.permute.xlu0 %1204
      %1207 = vset.pattern.permute.xlu0 1
      %1208 = vperm.xlu0 %1207, %v411
      %v1209 = vpop.permute.xlu0 %1208
      %1211 = vset.pattern.permute.xlu0 1
      %1212 = vperm.xlu0 %1211, %v412
      %v1213 = vpop.permute.xlu0 %1212
      %1215 = vset.pattern.permute.xlu0 1
      %1216 = vperm.xlu0 %1215, %v413
      %v1217 = vpop.permute.xlu0 %1216
      %1219 = vset.pattern.permute.xlu0 1
      %1220 = vperm.xlu0 %1219, %v414
      %v1221 = vpop.permute.xlu0 %1220
      %1223 = vset.pattern.permute.xlu0 1
      %1224 = vperm.xlu0 %1223, %v415
      %v1225 = vpop.permute.xlu0 %1224
      %1227 = vset.pattern.permute.xlu0 1
      %1228 = vperm.xlu0 %1227, %v416
      %v1229 = vpop.permute.xlu0 %1228
      %1231 = vset.pattern.permute.xlu0 1
      %1232 = vperm.xlu0 %1231, %v417
      %v1233 = vpop.permute.xlu0 %1232
      %1235 = vset.pattern.permute.xlu0 1
      %1236 = vperm.xlu0 %1235, %v418
      %v1237 = vpop.permute.xlu0 %1236
      %1239 = vset.pattern.permute.xlu0 1
      %1240 = vperm.xlu0 %1239, %v419
      %v1241 = vpop.permute.xlu0 %1240
      %1243 = vset.pattern.permute.xlu0 1
      %1244 = vperm.xlu0 %1243, %v420
      %v1245 = vpop.permute.xlu0 %1244
      %1247 = vset.pattern.permute.xlu0 1
      %1248 = vperm.xlu0 %1247, %v421
      %v1249 = vpop.permute.xlu0 %1248
      %v1251 = vmul.f32 %v358, %v1189
      %v1252 = vmul.f32 %v359, %v1193
      %v1253 = vmul.f32 %v360, %v1197
      %v1254 = vmul.f32 %v361, %v1201
      %v1255 = vmul.f32 %v362, %v1205
      %v1256 = vmul.f32 %v363, %v1209
      %v1257 = vmul.f32 %v364, %v1213
      %v1258 = vmul.f32 %v365, %v1217
      %v1259 = vmul.f32 %v366, %v1221
      %v1260 = vmul.f32 %v367, %v1225
      %v1261 = vmul.f32 %v368, %v1229
      %v1262 = vmul.f32 %v369, %v1233
      %v1263 = vmul.f32 %v370, %v1237
      %v1264 = vmul.f32 %v371, %v1241
      %v1265 = vmul.f32 %v372, %v1245
      %v1266 = vmul.f32 %v373, %v1249
      %v1267 = vld [vmem:[%s5] sm:$0x3f]
      %1284 = vrot.lane.b32.xlu0 %v1251, 118
      %v1285 = vpop.permute.xlu0 %1284
      %1286 = vrot.lane.b32.xlu0 %v1252, 118
      %v1287 = vpop.permute.xlu0 %1286
      %1288 = vrot.lane.b32.xlu0 %v1253, 118
      %v1289 = vpop.permute.xlu0 %1288
      %1290 = vrot.lane.b32.xlu0 %v1254, 118
      %v1291 = vpop.permute.xlu0 %1290
      %1292 = vrot.lane.b32.xlu0 %v1255, 118
      %v1293 = vpop.permute.xlu0 %1292
      %1294 = vrot.lane.b32.xlu0 %v1256, 118
      %v1295 = vpop.permute.xlu0 %1294
      %1296 = vrot.lane.b32.xlu0 %v1257, 118
      %v1297 = vpop.permute.xlu0 %1296
      %1298 = vrot.lane.b32.xlu0 %v1258, 118
      %v1299 = vpop.permute.xlu0 %1298
      %1300 = vrot.lane.b32.xlu0 %v1259, 118
      %v1301 = vpop.permute.xlu0 %1300
      %1302 = vrot.lane.b32.xlu0 %v1260, 118
      %v1303 = vpop.permute.xlu0 %1302
      %1304 = vrot.lane.b32.xlu0 %v1261, 118
      %v1305 = vpop.permute.xlu0 %1304
      %1306 = vrot.lane.b32.xlu0 %v1262, 118
      %v1307 = vpop.permute.xlu0 %1306
      %1308 = vrot.lane.b32.xlu0 %v1263, 118
      %v1309 = vpop.permute.xlu0 %1308
      %1310 = vrot.lane.b32.xlu0 %v1264, 118
      %v1311 = vpop.permute.xlu0 %1310
      %1312 = vrot.lane.b32.xlu0 %v1265, 118
      %v1313 = vpop.permute.xlu0 %1312
      %1314 = vrot.lane.b32.xlu0 %v1266, 118
      %v1315 = vpop.permute.xlu0 %1314
      %v1316 = vsel %vm1070, %v1285, 0
      %v1318 = vsel %vm1070, %v1287, 0
      %v1320 = vsel %vm1070, %v1289, 0
      %v1322 = vsel %vm1070, %v1291, 0
      %v1324 = vsel %vm1070, %v1293, 0
      %v1326 = vsel %vm1070, %v1295, 0
      %v1328 = vsel %vm1070, %v1297, 0
      %v1330 = vsel %vm1070, %v1299, 0
      %v1332 = vsel %vm1070, %v1301, 0
      %v1334 = vsel %vm1070, %v1303, 0
      %v1336 = vsel %vm1070, %v1305, 0
      %v1338 = vsel %vm1070, %v1307, 0
      %v1340 = vsel %vm1070, %v1309, 0
      %v1342 = vsel %vm1070, %v1311, 0
      %v1344 = vsel %vm1070, %v1313, 0
      %v1346 = vsel %vm1070, %v1315, 0
      %v1349 = vsel %vm856, %v1267, 0
      %1351 = vmatpush.msra.mxu0 0.0
      %1352 = vmatpush.msra.mxu0 0.0
      %1353 = vmatpush.msra.mxu0 0.0
      %1354 = vmatpush.msra.mxu0 0.0
      %1355 = vmatpush.msra.mxu0 0.0
      %1356 = vmatpush.msra.mxu0 0.0
      %1357 = vmatpush.msra.mxu0 0.0
      %1358 = vmatpush.msra.mxu0 0.0
      %1359 = vmatpush.msra.mxu0 0.0
      %1360 = vmatpush.msra.mxu0 0.0
      %1361 = vmatpush.msra.mxu0 0.0
      %1362 = vmatpush.msra.mxu0 0.0
      %1363 = vmatpush.msra.mxu0 0.0
      %1364 = vmatpush.msra.mxu0 0.0
      %1365 = vmatpush.msra.mxu0 0.0
      %1366 = vmatpush.msra.mxu0 %v1349
      %1367 = vmatmul.f32.gmra.mxu0 %v1316
      %v1368 = vpop.f32.mrf.mxu0
      %v1369 = vadd.f32 0.0, %v1368
      %1370 = vmatmul.f32.gmra.mxu0 %v1318
      %v1371 = vpop.f32.mrf.mxu0
      %v1372 = vadd.f32 0.0, %v1371
      %1373 = vmatmul.f32.gmra.mxu0 %v1320
      %v1374 = vpop.f32.mrf.mxu0
      %v1375 = vadd.f32 0.0, %v1374
      %1376 = vmatmul.f32.gmra.mxu0 %v1322
      %v1377 = vpop.f32.mrf.mxu0
      %v1378 = vadd.f32 0.0, %v1377
      %1379 = vmatmul.f32.gmra.mxu0 %v1324
      %v1380 = vpop.f32.mrf.mxu0
      %v1381 = vadd.f32 0.0, %v1380
      %1382 = vmatmul.f32.gmra.mxu0 %v1326
      %v1383 = vpop.f32.mrf.mxu0
      %v1384 = vadd.f32 0.0, %v1383
      %1385 = vmatmul.f32.gmra.mxu0 %v1328
      %v1386 = vpop.f32.mrf.mxu0
      %v1387 = vadd.f32 0.0, %v1386
      %1388 = vmatmul.f32.gmra.mxu0 %v1330
      %v1389 = vpop.f32.mrf.mxu0
      %v1390 = vadd.f32 0.0, %v1389
      %1391 = vmatmul.f32.gmra.mxu0 %v1332
      %v1392 = vpop.f32.mrf.mxu0
      %v1393 = vadd.f32 0.0, %v1392
      %1394 = vmatmul.f32.gmra.mxu0 %v1334
      %v1395 = vpop.f32.mrf.mxu0
      %v1396 = vadd.f32 0.0, %v1395
      %1397 = vmatmul.f32.gmra.mxu0 %v1336
      %v1398 = vpop.f32.mrf.mxu0
      %v1399 = vadd.f32 0.0, %v1398
      %1400 = vmatmul.f32.gmra.mxu0 %v1338
      %v1401 = vpop.f32.mrf.mxu0
      %v1402 = vadd.f32 0.0, %v1401
      %1403 = vmatmul.f32.gmra.mxu0 %v1340
      %v1404 = vpop.f32.mrf.mxu0
      %v1405 = vadd.f32 0.0, %v1404
      %1406 = vmatmul.f32.gmra.mxu0 %v1342
      %v1407 = vpop.f32.mrf.mxu0
      %v1408 = vadd.f32 0.0, %v1407
      %1409 = vmatmul.f32.gmra.mxu0 %v1344
      %v1410 = vpop.f32.mrf.mxu0
      %v1411 = vadd.f32 0.0, %v1410
      %1412 = vmatmul.f32.gmra.mxu0 %v1346
      %v1413 = vpop.f32.mrf.mxu0
      %v1414 = vadd.f32 0.0, %v1413
      %1415 = vdwg.mxu0
      %v1416 = vadd.f32 %v1171, %v1369
      %v1417 = vadd.f32 %v1172, %v1372
      %v1418 = vadd.f32 %v1173, %v1375
      %v1419 = vadd.f32 %v1174, %v1378
      %v1420 = vadd.f32 %v1175, %v1381
      %v1421 = vadd.f32 %v1176, %v1384
      %v1422 = vadd.f32 %v1177, %v1387
      %v1423 = vadd.f32 %v1178, %v1390
      %v1424 = vadd.f32 %v1179, %v1393
      %v1425 = vadd.f32 %v1180, %v1396
      %v1426 = vadd.f32 %v1181, %v1399
      %v1427 = vadd.f32 %v1182, %v1402
      %v1428 = vadd.f32 %v1183, %v1405
      %v1429 = vadd.f32 %v1184, %v1408
      %v1430 = vadd.f32 %v1185, %v1411
      %v1431 = vadd.f32 %v1186, %v1414
      %v1432 = vperm.slane %v682, 1
      %v1433 = vmul.f32 %v928, %v1432
      %v1434 = vmul.f32 %v933, %v1432
      %v1435 = vmul.f32 %v938, %v1432
      %v1436 = vmul.f32 %v943, %v1432
      %v1437 = vmul.f32 %v948, %v1432
      %v1438 = vmul.f32 %v953, %v1432
      %v1439 = vmul.f32 %v958, %v1432
      %v1440 = vmul.f32 %v963, %v1432
      %v1441 = vmul.f32 %v968, %v1432
      %v1442 = vmul.f32 %v973, %v1432
      %v1443 = vmul.f32 %v978, %v1432
      %v1444 = vmul.f32 %v983, %v1432
      %v1445 = vmul.f32 %v988, %v1432
      %v1446 = vmul.f32 %v993, %v1432
      %v1447 = vmul.f32 %v998, %v1432
      %v1448 = vmul.f32 %v1003, %v1432
      %v1449 = vadd.f32 %v1416, %v1433
      %v1450 = vadd.f32 %v1417, %v1434
      %v1451 = vadd.f32 %v1418, %v1435
      %v1452 = vadd.f32 %v1419, %v1436
      %v1453 = vadd.f32 %v1420, %v1437
      %v1454 = vadd.f32 %v1421, %v1438
      %v1455 = vadd.f32 %v1422, %v1439
      %v1456 = vadd.f32 %v1423, %v1440
      %v1457 = vadd.f32 %v1424, %v1441
      %v1458 = vadd.f32 %v1425, %v1442
      %v1459 = vadd.f32 %v1426, %v1443
      %v1460 = vadd.f32 %v1427, %v1444
      %v1461 = vadd.f32 %v1428, %v1445
      %v1462 = vadd.f32 %v1429, %v1446
      %v1463 = vadd.f32 %v1430, %v1447
      %v1464 = vadd.f32 %v1431, %v1448
      %v1465 = vperm.slane %v682, 2
      %v1466 = vmul.f32 %v1189, %v1465
      %v1467 = vmul.f32 %v1193, %v1465
      %v1468 = vmul.f32 %v1197, %v1465
      %v1469 = vmul.f32 %v1201, %v1465
      %v1470 = vmul.f32 %v1205, %v1465
      %v1471 = vmul.f32 %v1209, %v1465
      %v1472 = vmul.f32 %v1213, %v1465
      %v1473 = vmul.f32 %v1217, %v1465
      %v1474 = vmul.f32 %v1221, %v1465
      %v1475 = vmul.f32 %v1225, %v1465
      %v1476 = vmul.f32 %v1229, %v1465
      %v1477 = vmul.f32 %v1233, %v1465
      %v1478 = vmul.f32 %v1237, %v1465
      %v1479 = vmul.f32 %v1241, %v1465
      %v1480 = vmul.f32 %v1245, %v1465
      %v1481 = vmul.f32 %v1249, %v1465
      %v1482 = vadd.f32 %v1449, %v1466
      %v1483 = vadd.f32 %v1450, %v1467
      %v1484 = vadd.f32 %v1451, %v1468
      %v1485 = vadd.f32 %v1452, %v1469
      %v1486 = vadd.f32 %v1453, %v1470
      %v1487 = vadd.f32 %v1454, %v1471
      %v1488 = vadd.f32 %v1455, %v1472
      %v1489 = vadd.f32 %v1456, %v1473
      %v1490 = vadd.f32 %v1457, %v1474
      %v1491 = vadd.f32 %v1458, %v1475
      %v1492 = vadd.f32 %v1459, %v1476
      %v1493 = vadd.f32 %v1460, %v1477
      %v1494 = vadd.f32 %v1461, %v1478
      %v1495 = vadd.f32 %v1462, %v1479
      %v1496 = vadd.f32 %v1463, %v1480
      %v1497 = vadd.f32 %v1464, %v1481
      %v1498 = vperm.slane %v682, 0
      %v1499 = vadd.f32 %v1482, %v1498
      %v1500 = vadd.f32 %v1483, %v1498
      %v1501 = vadd.f32 %v1484, %v1498
      %v1502 = vadd.f32 %v1485, %v1498
      %v1503 = vadd.f32 %v1486, %v1498
      %v1504 = vadd.f32 %v1487, %v1498
      %v1505 = vadd.f32 %v1488, %v1498
      %v1506 = vadd.f32 %v1489, %v1498
      %v1507 = vadd.f32 %v1490, %v1498
      %v1508 = vadd.f32 %v1491, %v1498
      %v1509 = vadd.f32 %v1492, %v1498
      %v1510 = vadd.f32 %v1493, %v1498
      %v1511 = vadd.f32 %v1494, %v1498
      %v1512 = vadd.f32 %v1495, %v1498
      %v1513 = vadd.f32 %v1496, %v1498
      %v1514 = vadd.f32 %v1497, %v1498
      %v1515 = vmax.f32 %v1499, 0.0
      %v1516 = vmax.f32 %v1500, 0.0
      %v1517 = vmax.f32 %v1501, 0.0
      %v1518 = vmax.f32 %v1502, 0.0
      %v1519 = vmax.f32 %v1503, 0.0
      %v1520 = vmax.f32 %v1504, 0.0
      %v1521 = vmax.f32 %v1505, 0.0
      %v1522 = vmax.f32 %v1506, 0.0
      %v1523 = vmax.f32 %v1507, 0.0
      %v1524 = vmax.f32 %v1508, 0.0
      %v1525 = vmax.f32 %v1509, 0.0
      %v1526 = vmax.f32 %v1510, 0.0
      %v1527 = vmax.f32 %v1511, 0.0
      %v1528 = vmax.f32 %v1512, 0.0
      %v1529 = vmax.f32 %v1513, 0.0
      %v1530 = vmax.f32 %v1514, 0.0
      %v1531 = vld [vmem:[%s6] sm:$0xff]
      %v1532 = vld [vmem:[%s6 + $0x8] sm:$0xff]
      %v1533 = vld [vmem:[%s6 + $0x10] sm:$0xff]
      %v1534 = vld [vmem:[%s6 + $0x18] sm:$0xff]
      %v1535 = vperm.slane %v682, 3
      %vm1536 = vcmask 261120
      %v1538 = vsel %vm1536, %v1515, 0
      %v1541 = vsel %vm1536, %v1516, 0
      %v1544 = vsel %vm1536, %v1517, 0
      %v1547 = vsel %vm1536, %v1518, 0
      %v1550 = vsel %vm1536, %v1519, 0
      %v1553 = vsel %vm1536, %v1520, 0
      %v1556 = vsel %vm1536, %v1521, 0
      %v1559 = vsel %vm1536, %v1522, 0
      %v1562 = vsel %vm1536, %v1523, 0
      %v1565 = vsel %vm1536, %v1524, 0
      %v1568 = vsel %vm1536, %v1525, 0
      %v1571 = vsel %vm1536, %v1526, 0
      %v1574 = vsel %vm1536, %v1527, 0
      %v1577 = vsel %vm1536, %v1528, 0
      %v1580 = vsel %vm1536, %v1529, 0
      %v1583 = vsel %vm1536, %v1530, 0
      %1585 = vmatpush.msra.mxu0 0.0
      %1586 = vmatpush.msra.mxu0 0.0
      %1587 = vmatpush.msra.mxu0 0.0
      %1588 = vmatpush.msra.mxu0 0.0
      %1589 = vmatpush.msra.mxu0 0.0
      %1590 = vmatpush.msra.mxu0 0.0
      %1591 = vmatpush.msra.mxu0 0.0
      %1592 = vmatpush.msra.mxu0 0.0
      %1593 = vmatpush.msra.mxu0 0.0
      %1594 = vmatpush.msra.mxu0 0.0
      %1595 = vmatpush.msra.mxu0 0.0
      %1596 = vmatpush.msra.mxu0 0.0
      %1597 = vmatpush.msra.mxu0 %v1534
      %1598 = vmatpush.msra.mxu0 %v1533
      %1599 = vmatpush.msra.mxu0 %v1532
      %1600 = vmatpush.msra.mxu0 %v1531
      %1601 = vmatmul.f32.gmra.mxu0 %v1538
      %v1602 = vpop.f32.mrf.mxu0
      %v1603 = vadd.f32 %v1535, %v1602
      %1604 = vmatmul.f32.gmra.mxu0 %v1541
      %v1605 = vpop.f32.mrf.mxu0
      %v1606 = vadd.f32 %v1535, %v1605
      %1607 = vmatmul.f32.gmra.mxu0 %v1544
      %v1608 = vpop.f32.mrf.mxu0
      %v1609 = vadd.f32 %v1535, %v1608
      %1610 = vmatmul.f32.gmra.mxu0 %v1547
      %v1611 = vpop.f32.mrf.mxu0
      %v1612 = vadd.f32 %v1535, %v1611
      %1613 = vmatmul.f32.gmra.mxu0 %v1550
      %v1614 = vpop.f32.mrf.mxu0
      %v1615 = vadd.f32 %v1535, %v1614
      %1616 = vmatmul.f32.gmra.mxu0 %v1553
      %v1617 = vpop.f32.mrf.mxu0
      %v1618 = vadd.f32 %v1535, %v1617
      %1619 = vmatmul.f32.gmra.mxu0 %v1556
      %v1620 = vpop.f32.mrf.mxu0
      %v1621 = vadd.f32 %v1535, %v1620
      %1622 = vmatmul.f32.gmra.mxu0 %v1559
      %v1623 = vpop.f32.mrf.mxu0
      %v1624 = vadd.f32 %v1535, %v1623
      %1625 = vmatmul.f32.gmra.mxu0 %v1562
      %v1626 = vpop.f32.mrf.mxu0
      %v1627 = vadd.f32 %v1535, %v1626
      %1628 = vmatmul.f32.gmra.mxu0 %v1565
      %v1629 = vpop.f32.mrf.mxu0
      %v1630 = vadd.f32 %v1535, %v1629
      %1631 = vmatmul.f32.gmra.mxu0 %v1568
      %v1632 = vpop.f32.mrf.mxu0
      %v1633 = vadd.f32 %v1535, %v1632
      %1634 = vmatmul.f32.gmra.mxu0 %v1571
      %v1635 = vpop.f32.mrf.mxu0
      %v1636 = vadd.f32 %v1535, %v1635
      %1637 = vmatmul.f32.gmra.mxu0 %v1574
      %v1638 = vpop.f32.mrf.mxu0
      %v1639 = vadd.f32 %v1535, %v1638
      %1640 = vmatmul.f32.gmra.mxu0 %v1577
      %v1641 = vpop.f32.mrf.mxu0
      %v1642 = vadd.f32 %v1535, %v1641
      %1643 = vmatmul.f32.gmra.mxu0 %v1580
      %v1644 = vpop.f32.mrf.mxu0
      %v1645 = vadd.f32 %v1535, %v1644
      %1646 = vmatmul.f32.gmra.mxu0 %v1583
      %v1647 = vpop.f32.mrf.mxu0
      %v1648 = vadd.f32 %v1535, %v1647
      %1649 = vdwg.mxu0
      %v1650 = vadd.f32 %v1603, %v1515
      %v1651 = vadd.f32 %v1606, %v1516
      %v1652 = vadd.f32 %v1609, %v1517
      %v1653 = vadd.f32 %v1612, %v1518
      %v1654 = vadd.f32 %v1615, %v1519
      %v1655 = vadd.f32 %v1618, %v1520
      %v1656 = vadd.f32 %v1621, %v1521
      %v1657 = vadd.f32 %v1624, %v1522
      %v1658 = vadd.f32 %v1627, %v1523
      %v1659 = vadd.f32 %v1630, %v1524
      %v1660 = vadd.f32 %v1633, %v1525
      %v1661 = vadd.f32 %v1636, %v1526
      %v1662 = vadd.f32 %v1639, %v1527
      %v1663 = vadd.f32 %v1642, %v1528
      %v1664 = vadd.f32 %v1645, %v1529
      %v1665 = vadd.f32 %v1648, %v1530
      %v1666 = vmax.f32 %v1650, 0.0
      %v1667 = vmax.f32 %v1651, 0.0
      %v1668 = vmax.f32 %v1652, 0.0
      %v1669 = vmax.f32 %v1653, 0.0
      %v1670 = vmax.f32 %v1654, 0.0
      %v1671 = vmax.f32 %v1655, 0.0
      %v1672 = vmax.f32 %v1656, 0.0
      %v1673 = vmax.f32 %v1657, 0.0
      %v1674 = vmax.f32 %v1658, 0.0
      %v1675 = vmax.f32 %v1659, 0.0
      %v1676 = vmax.f32 %v1660, 0.0
      %v1677 = vmax.f32 %v1661, 0.0
      %v1678 = vmax.f32 %v1662, 0.0
      %v1679 = vmax.f32 %v1663, 0.0
      %v1680 = vmax.f32 %v1664, 0.0
      %v1681 = vmax.f32 %v1665, 0.0
      %v1682 = vld [vmem:[%s7] sm:$0xff]
      %v1683 = vld [vmem:[%s7 + $0x8] sm:$0xff]
      %v1684 = vld [vmem:[%s7 + $0x10] sm:$0xff]
      %v1685 = vld [vmem:[%s7 + $0x18] sm:$0xff]
      %v1686 = vperm.slane %v682, 4
      %v1688 = vsel %vm1536, %v1666, 0
      %v1691 = vsel %vm1536, %v1667, 0
      %v1694 = vsel %vm1536, %v1668, 0
      %v1697 = vsel %vm1536, %v1669, 0
      %v1700 = vsel %vm1536, %v1670, 0
      %v1703 = vsel %vm1536, %v1671, 0
      %v1706 = vsel %vm1536, %v1672, 0
      %v1709 = vsel %vm1536, %v1673, 0
      %v1712 = vsel %vm1536, %v1674, 0
      %v1715 = vsel %vm1536, %v1675, 0
      %v1718 = vsel %vm1536, %v1676, 0
      %v1721 = vsel %vm1536, %v1677, 0
      %v1724 = vsel %vm1536, %v1678, 0
      %v1727 = vsel %vm1536, %v1679, 0
      %v1730 = vsel %vm1536, %v1680, 0
      %v1733 = vsel %vm1536, %v1681, 0
      %1735 = vmatpush.msra.mxu0 0.0
      %1736 = vmatpush.msra.mxu0 0.0
      %1737 = vmatpush.msra.mxu0 0.0
      %1738 = vmatpush.msra.mxu0 0.0
      %1739 = vmatpush.msra.mxu0 0.0
      %1740 = vmatpush.msra.mxu0 0.0
      %1741 = vmatpush.msra.mxu0 0.0
      %1742 = vmatpush.msra.mxu0 0.0
      %1743 = vmatpush.msra.mxu0 0.0
      %1744 = vmatpush.msra.mxu0 0.0
      %1745 = vmatpush.msra.mxu0 0.0
      %1746 = vmatpush.msra.mxu0 0.0
      %1747 = vmatpush.msra.mxu0 %v1685
      %1748 = vmatpush.msra.mxu0 %v1684
      %1749 = vmatpush.msra.mxu0 %v1683
      %1750 = vmatpush.msra.mxu0 %v1682
      %1751 = vmatmul.f32.gmra.mxu0 %v1688
      %v1752 = vpop.f32.mrf.mxu0
      %v1753 = vadd.f32 %v1686, %v1752
      %1754 = vmatmul.f32.gmra.mxu0 %v1691
      %v1755 = vpop.f32.mrf.mxu0
      %v1756 = vadd.f32 %v1686, %v1755
      %1757 = vmatmul.f32.gmra.mxu0 %v1694
      %v1758 = vpop.f32.mrf.mxu0
      %v1759 = vadd.f32 %v1686, %v1758
      %1760 = vmatmul.f32.gmra.mxu0 %v1697
      %v1761 = vpop.f32.mrf.mxu0
      %v1762 = vadd.f32 %v1686, %v1761
      %1763 = vmatmul.f32.gmra.mxu0 %v1700
      %v1764 = vpop.f32.mrf.mxu0
      %v1765 = vadd.f32 %v1686, %v1764
      %1766 = vmatmul.f32.gmra.mxu0 %v1703
      %v1767 = vpop.f32.mrf.mxu0
      %v1768 = vadd.f32 %v1686, %v1767
      %1769 = vmatmul.f32.gmra.mxu0 %v1706
      %v1770 = vpop.f32.mrf.mxu0
      %v1771 = vadd.f32 %v1686, %v1770
      %1772 = vmatmul.f32.gmra.mxu0 %v1709
      %v1773 = vpop.f32.mrf.mxu0
      %v1774 = vadd.f32 %v1686, %v1773
      %1775 = vmatmul.f32.gmra.mxu0 %v1712
      %v1776 = vpop.f32.mrf.mxu0
      %v1777 = vadd.f32 %v1686, %v1776
      %1778 = vmatmul.f32.gmra.mxu0 %v1715
      %v1779 = vpop.f32.mrf.mxu0
      %v1780 = vadd.f32 %v1686, %v1779
      %1781 = vmatmul.f32.gmra.mxu0 %v1718
      %v1782 = vpop.f32.mrf.mxu0
      %v1783 = vadd.f32 %v1686, %v1782
      %1784 = vmatmul.f32.gmra.mxu0 %v1721
      %v1785 = vpop.f32.mrf.mxu0
      %v1786 = vadd.f32 %v1686, %v1785
      %1787 = vmatmul.f32.gmra.mxu0 %v1724
      %v1788 = vpop.f32.mrf.mxu0
      %v1789 = vadd.f32 %v1686, %v1788
      %1790 = vmatmul.f32.gmra.mxu0 %v1727
      %v1791 = vpop.f32.mrf.mxu0
      %v1792 = vadd.f32 %v1686, %v1791
      %1793 = vmatmul.f32.gmra.mxu0 %v1730
      %v1794 = vpop.f32.mrf.mxu0
      %v1795 = vadd.f32 %v1686, %v1794
      %1796 = vmatmul.f32.gmra.mxu0 %v1733
      %v1797 = vpop.f32.mrf.mxu0
      %v1798 = vadd.f32 %v1686, %v1797
      %1799 = vdwg.mxu0
      %v1800 = vadd.f32 %v1753, %v1666
      %v1801 = vadd.f32 %v1756, %v1667
      %v1802 = vadd.f32 %v1759, %v1668
      %v1803 = vadd.f32 %v1762, %v1669
      %v1804 = vadd.f32 %v1765, %v1670
      %v1805 = vadd.f32 %v1768, %v1671
      %v1806 = vadd.f32 %v1771, %v1672
      %v1807 = vadd.f32 %v1774, %v1673
      %v1808 = vadd.f32 %v1777, %v1674
      %v1809 = vadd.f32 %v1780, %v1675
      %v1810 = vadd.f32 %v1783, %v1676
      %v1811 = vadd.f32 %v1786, %v1677
      %v1812 = vadd.f32 %v1789, %v1678
      %v1813 = vadd.f32 %v1792, %v1679
      %v1814 = vadd.f32 %v1795, %v1680
      %v1815 = vadd.f32 %v1798, %v1681
      %v1816 = vmax.f32 %v1800, 0.0
      %v1817 = vmax.f32 %v1801, 0.0
      %v1818 = vmax.f32 %v1802, 0.0
      %v1819 = vmax.f32 %v1803, 0.0
      %v1820 = vmax.f32 %v1804, 0.0
      %v1821 = vmax.f32 %v1805, 0.0
      %v1822 = vmax.f32 %v1806, 0.0
      %v1823 = vmax.f32 %v1807, 0.0
      %v1824 = vmax.f32 %v1808, 0.0
      %v1825 = vmax.f32 %v1809, 0.0
      %v1826 = vmax.f32 %v1810, 0.0
      %v1827 = vmax.f32 %v1811, 0.0
      %v1828 = vmax.f32 %v1812, 0.0
      %v1829 = vmax.f32 %v1813, 0.0
      %v1830 = vmax.f32 %v1814, 0.0
      %v1831 = vmax.f32 %v1815, 0.0
      %1832 = vst.msk [vmem:[%s356] sm:$0xff] %vm1536, %v1816
      %1833 = vst.msk [vmem:[%s356 + $0x8] sm:$0xff] %vm1536, %v1817
      %1834 = vst.msk [vmem:[%s356 + $0x10] sm:$0xff] %vm1536, %v1818
      %1835 = vst.msk [vmem:[%s356 + $0x18] sm:$0xff] %vm1536, %v1819
      %1836 = vst.msk [vmem:[%s356 + $0x20] sm:$0xff] %vm1536, %v1820
      %1837 = vst.msk [vmem:[%s356 + $0x28] sm:$0xff] %vm1536, %v1821
      %1838 = vst.msk [vmem:[%s356 + $0x30] sm:$0xff] %vm1536, %v1822
      %1839 = vst.msk [vmem:[%s356 + $0x38] sm:$0xff] %vm1536, %v1823
      %1840 = vst.msk [vmem:[%s356 + $0x40] sm:$0xff] %vm1536, %v1824
      %1841 = vst.msk [vmem:[%s356 + $0x48] sm:$0xff] %vm1536, %v1825
      %1842 = vst.msk [vmem:[%s356 + $0x50] sm:$0xff] %vm1536, %v1826
      %1843 = vst.msk [vmem:[%s356 + $0x58] sm:$0xff] %vm1536, %v1827
      %1844 = vst.msk [vmem:[%s356 + $0x60] sm:$0xff] %vm1536, %v1828
      %1845 = vst.msk [vmem:[%s356 + $0x68] sm:$0xff] %vm1536, %v1829
      %1846 = vst.msk [vmem:[%s356 + $0x70] sm:$0xff] %vm1536, %v1830
      %1847 = vst.msk [vmem:[%s356 + $0x78] sm:$0xff] %vm1536, %v1831
      %s1848 = smul.u32 16, %s20
      %p1849 = scmp.lt.s32.totalorder %s1848, 31
      %s1850 = scalar_select %p1849, %s1848, 31
      %s1851 = smul.addr %s1850, 8
      %s1852 = scalar_lea.vmem %s9, %s1851
      // Predicated region
      $region57: #{tpu_custom_call.1} parent=55 // pred_check
        %p1853 = pneg %p237
      $region58: #{tpu_custom_call.1} parent=55 // pred_check_branch
        %1855 = sbr.rel (%p1853) target = $region60
      $region59: #{tpu_custom_call.1} parent=55 // pred_region
        %s1856 = smul.u32 16, %s20
      $region60: #{tpu_custom_call.1} parent=55 // pred_fallthru
        _
    $region56: #{tpu_custom_call.1} parent=5 // pred_fallthru
      _
    %p1857 = scmp.le.s32.totalorder 2, %s15
    // Predicated region
    $region61: #{tpu_custom_call.1} parent=5 // pred_check
      %p1858 = pneg %p1857
    $region62: #{tpu_custom_call.1} parent=5 // pred_check_branch
      %1860 = sbr.rel (%p1858) target = $region64
    $region63: #{tpu_custom_call.1} parent=5 // pred_region
      %s1861 = ssub.s32 %s15, 2
      // Predicated region
      $region65: #{tpu_custom_call.1} parent=63 // pred_check
        %p1862 = pneg %p243
      $region66: #{tpu_custom_call.1} parent=63 // pred_check_branch
        %1864 = sbr.rel (%p1862) target = $region68
      $region67: #{tpu_custom_call.1} parent=63 // pred_region
        %s1865 = smul.u32 16, %s21
        %p1866 = scmp.lt.s32.totalorder %s1865, 31
        %s1867 = scalar_select %p1866, %s1865, 31
        %s1868 = smul.addr %s1867, 8
        %s1869 = scalar_lea.vmem %s9, %s1868
      $region68: #{tpu_custom_call.1} parent=63 // pred_fallthru
        _
    $region64: #{tpu_custom_call.1} parent=5 // pred_fallthru
      _
  $region6: #{tpu_custom_call.1} parent=0 // loop_footer
    %s19 = sadd.s32 1, %s15
  $region7: #{tpu_custom_call.1} parent=0 // loop_footer_branch
    %14 = sbr.rel target = $region3
  $region8: #{tpu_custom_call.1} parent=0 // loop_exit
    _

</llo_original>
